<compile_context>
chip_gen: v5e
topology: v5e:2x2
jax: 0.10.0
libtpu: 0.0.40
codegen_flags: <defaults>
</compile_context>

<pallas_src>
import functools

import jax
import jax.numpy as jnp
from jax import lax
from jax.experimental import pallas as pl
from jax.experimental.pallas import tpu as pltpu


def _round_up(x, m):
    return (x + m - 1) // m * m


def _pick_t_chunk(seq_len, fits):
    """Largest chunk dividing S (preferring multiples of 8) that fits VMEM."""
    cands = [c for c in range(min(seq_len, 256), 0, -1) if seq_len % c == 0]
    cands.sort(key=lambda c: (c % 8 != 0, -c))
    for c in cands:
        if fits(c):
            return c
    return cands[-1] if cands else seq_len


def _invariant_spec(shape, single_buffer=True):
    """BlockSpec for a grid-invariant operand; single-buffered when supported."""
    idx = lambda t: tuple(0 for _ in shape)
    buffered = getattr(pl, "Buffered", None)
    if single_buffer and buffered is not None:
        try:
            return pl.BlockSpec(shape, idx, pipeline_mode=buffered(1))
        except TypeError:
            pass  # older Pallas without pipeline_mode: default pipelining
    return pl.BlockSpec(shape, idx)


def _cpc_lstm_chunk_kernel(x_ref, wih_ref, bias_ref, whh_ref, wproj_ref,
                           out_ref, h_scr, c_scr, ig_scr, hs_scr,
                           *, hidden_pad, t_chunk, batch_pad, unroll):
    """One grid step == t_chunk LSTM timesteps + one fused chunk projection.

    x_ref    : (t_chunk, B_pad, D)      time-major input chunk
    wih_ref  : (D, 4*H_pad)             input->gates weights (transposed, padded)
    bias_ref : (1, 4*H_pad)             b_ih + b_hh (padded), f32
    whh_ref  : (H_pad, 4*H_pad)         hidden->gates weights (transposed, padded)
    wproj_ref: (H_pad, D_pad)           projection weights (transposed, padded)
    out_ref  : (t_chunk, B_pad, D_pad)  lane-dense time-major output chunk
    h_scr/c_scr : (B_pad, H_pad) f32    carries, persist across grid iterations
    ig_scr   : (t_chunk, B_pad, 4*H_pad) f32   chunk input-gates scratch
    hs_scr   : (t_chunk, B_pad, H_pad)  chunk hidden-state stash
    """
    H = hidden_pad
    G = 4 * H
    Bp = batch_pad
    f32 = jnp.float32

    @pl.when(pl.program_id(0) == 0)
    def _():
        h_scr[...] = jnp.zeros(h_scr.shape, h_scr.dtype)
        c_scr[...] = jnp.zeros(c_scr.shape, c_scr.dtype)

    cdt = whh_ref.dtype
    inp_dim = x_ref.shape[-1]

    # Non-recurrent half for the whole chunk: ONE (t_chunk*B_pad, D) x (D, 4H)
    # MXU matmul, kept in f32 in VMEM (no HBM round-trip of the gate slab).
    xc = x_ref[...].astype(cdt).reshape(t_chunk * Bp, inp_dim)
    ig = jnp.dot(xc, wih_ref[...], preferred_element_type=f32) + bias_ref[...]
    ig_scr[...] = ig.reshape(t_chunk, Bp, G)

    whh = whh_ref[...]                     # resident for the whole chunk

    def step(j, carry):
        h, c = carry                       # loop-carried in vregs (no VMEM RT)
        gates = ig_scr[j] + jnp.dot(h.astype(cdt), whh,
                                    preferred_element_type=f32)
        # PyTorch gate order (i, f, g, o); every slice is 128-lane aligned.
        i_g = jax.nn.sigmoid(gates[:, 0 * H:1 * H])
        f_g = jax.nn.sigmoid(gates[:, 1 * H:2 * H])
        g_g = jnp.tanh(gates[:, 2 * H:3 * H])
        o_g = jax.nn.sigmoid(gates[:, 3 * H:4 * H])
        c_new = f_g * c + i_g * g_g
        h_new = o_g * jnp.tanh(c_new)
        hs_scr[j] = h_new.astype(hs_scr.dtype)   # ONE contiguous store per step
        return h_new, c_new

    h_fin, c_fin = lax.fori_loop(0, t_chunk, step,
                                 (h_scr[...], c_scr[...]), unroll=unroll)
    h_scr[...] = h_fin                     # write carries back once per chunk
    c_scr[...] = c_fin

    # Fused chunk projection: ONE (t_chunk*B_pad, H_pad) x (H_pad, D_pad) MXU
    # matmul, written as a single lane-dense time-major output block.
    hs = hs_scr[...].reshape(t_chunk * Bp, H)
    proj = jnp.dot(hs, wproj_ref[...], preferred_element_type=f32)
    out_ref[...] = proj.reshape(t_chunk, Bp, -1).astype(out_ref.dtype)


def cpc_minion_forward(x_bsd, params, *, compute_dtype=jnp.bfloat16,
                       t_chunk=None, single_buffer_weights=True):
    """Equivalent of CPCMinion.forward.

    x_bsd : (batch, seq, inp_dim) float32 (batch_first, like the PyTorch module)
    params: dict with 'w_ih' (4H, D), 'w_hh' (4H, H), 'b_ih' (4H,), 'b_hh' (4H,),
            'w_proj' (D, H)  -- PyTorch parameter layout.
    Returns (input_encoded, proj(lstm(input_encoded))) just like the module.
    NOTE: compute_dtype=bfloat16 casts weights / MXU operands to bf16 (f32
          accumulation & gate math); pass jnp.float32 for bit-close semantics.
    """
    B, S, D = x_bsd.shape
    H = params['w_hh'].shape[1]
    f32 = jnp.float32
    cdt = jnp.dtype(compute_dtype)
    H_pad = _round_up(max(H, 128), 128)
    D_pad = _round_up(max(D, 128), 128)
    G = 4 * H_pad
    B_pad = _round_up(B, 8)

    # ---- Repack weights: transpose + pad every gate block to H_pad lanes. ----
    w_ih4 = jnp.pad(params['w_ih'].astype(f32).reshape(4, H, D),
                    ((0, 0), (0, H_pad - H), (0, 0)))
    wih_t = jnp.transpose(w_ih4, (2, 0, 1)).reshape(D, G).astype(cdt)

    w_hh4 = jnp.pad(params['w_hh'].astype(f32).reshape(4, H, H),
                    ((0, 0), (0, H_pad - H), (0, H_pad - H)))
    whh_t = jnp.transpose(w_hh4, (2, 0, 1)).reshape(H_pad, G).astype(cdt)

    bias = jnp.pad((params['b_ih'] + params['b_hh']).astype(f32).reshape(4, H),
                   ((0, 0), (0, H_pad - H))).reshape(1, G)            # f32

    wproj_t = jnp.pad(params['w_proj'].astype(f32).T,
                      ((0, H_pad - H), (0, D_pad - D))).astype(cdt)   # (H_pad, D_pad)

    # ---- Time-major input, batch padded to a sublane multiple (8). -----------
    x_sbd = jnp.transpose(x_bsd.astype(f32), (1, 0, 2))
    if B_pad != B:
        x_sbd = jnp.pad(x_sbd, ((0, 0), (0, B_pad - B), (0, 0)))

    # ---- VMEM budget (v7x: 64 MiB/TC, v5e/v6e: 128 MiB) & chunk selection. ---
    try:
        vmem_cap = int(pltpu.get_tpu_info().vmem_capacity_bytes)
    except Exception:
        vmem_cap = 64 * 1024 * 1024     # conservative (v7x) when unknown

    itemsize = cdt.itemsize
    w_bytes = (D * G + H_pad * G + H_pad * D_pad) * itemsize + G * 4

    def vmem_bytes(tc):
        x_blk = tc * B_pad * D * 4
        out_blk = tc * B_pad * D_pad * 4
        scr = (tc * B_pad * G * 4                 # ig scratch (f32)
               + tc * B_pad * H_pad * itemsize    # hidden stash
               + 2 * B_pad * H_pad * 4)           # h/c carries
        return 2 * x_blk + 2 * out_blk + 2 * w_bytes + scr

    if t_chunk is None:
        budget = int(vmem_cap * 0.6)
        t_chunk = _pick_t_chunk(S, lambda tc: vmem_bytes(tc) <= budget)
    assert S % t_chunk == 0, "t_chunk must divide the sequence length"
    num_chunks = S // t_chunk
    unroll = int(t_chunk) if t_chunk <= 16 else 8   # partial unroll (LLO overlap)

    vmem_est = vmem_bytes(t_chunk)
    vmem_limit = None
    if vmem_est > 12 * 1024 * 1024:
        vmem_limit = min(int(vmem_est * 3 // 2) + (4 << 20),
                         int(vmem_cap * 0.85))

    cost = pl.CostEstimate(
        flops=2 * S * B_pad * (D * G + H_pad * G + H_pad * D_pad),
        transcendentals=5 * S * B_pad * H_pad,
        bytes_accessed=S * B_pad * (D + D_pad) * 4 + w_bytes)

    kernel = functools.partial(
        _cpc_lstm_chunk_kernel, hidden_pad=H_pad, t_chunk=t_chunk,
        batch_pad=B_pad, unroll=unroll)

    grid_spec = pltpu.PrefetchScalarGridSpec(
        num_scalar_prefetch=0,
        grid=(num_chunks,),
        in_specs=[
            pl.BlockSpec((t_chunk, B_pad, D), lambda t: (t, 0, 0)),
            _invariant_spec((D, G), single_buffer_weights),
            _invariant_spec((1, G), single_buffer_weights),
            _invariant_spec((H_pad, G), single_buffer_weights),
            _invariant_spec((H_pad, D_pad), single_buffer_weights),
        ],
        out_specs=pl.BlockSpec((t_chunk, B_pad, D_pad), lambda t: (t, 0, 0)),
        scratch_shapes=[
            pltpu.VMEM((B_pad, H_pad), f32),            # h carry
            pltpu.VMEM((B_pad, H_pad), f32),            # c carry
            pltpu.VMEM((t_chunk, B_pad, G), f32),       # chunk input gates
            pltpu.VMEM((t_chunk, B_pad, H_pad), cdt),   # chunk hidden stash
        ])

    out_tm = pl.pallas_call(
        kernel,
        out_shape=jax.ShapeDtypeStruct((S, B_pad, D_pad), f32),
        grid_spec=grid_spec,
        compiler_params=pltpu.CompilerParams(
            dimension_semantics=("arbitrary",),         # serial recurrence
            vmem_limit_bytes=vmem_limit),
        cost_estimate=cost,
    )(x_sbd, wih_t, bias, whh_t, wproj_t)

    # Lane-dense time-major kernel output -> batch_first, drop padding (XLA).
    proj = jnp.transpose(out_tm, (1, 0, 2))[:B, :, :D]
    return x_bsd, proj


def _reference_forward(x_bsd, params):
    """Pure-JAX reference (lax.scan LSTM) used to verify the kernel."""
    B, S, D = x_bsd.shape
    H = params['w_hh'].shape[1]
    wih_t = params['w_ih'].T
    whh_t = params['w_hh'].T
    bias = params['b_ih'] + params['b_hh']
    wproj_t = params['w_proj'].T

    def step(carry, xt):
        h, c = carry
        gates = xt @ wih_t + h @ whh_t + bias
        i = jax.nn.sigmoid(gates[:, 0 * H:1 * H])
        f = jax.nn.sigmoid(gates[:, 1 * H:2 * H])
        g = jnp.tanh(gates[:, 2 * H:3 * H])
        o = jax.nn.sigmoid(gates[:, 3 * H:4 * H])
        c_new = f * c + i * g
        h_new = o * jnp.tanh(c_new)
        return (h_new, c_new), h_new @ wproj_t

    x_sbd = jnp.transpose(x_bsd, (1, 0, 2))
    init = (jnp.zeros((B, H), jnp.float32), jnp.zeros((B, H), jnp.float32))
    _, out_sbd = lax.scan(step, init, x_sbd)
    return x_bsd, jnp.transpose(out_sbd, (1, 0, 2))


def init_params(key, inp_dim, n_hidden):
    """Deterministic synthetic init matching PyTorch LSTM/Linear parameter shapes."""
    H, D = n_hidden, inp_dim
    k = 1.0 / jnp.sqrt(jnp.float32(H))
    keys = jax.random.split(key, 5)
    u = lambda kk, shape: jax.random.uniform(kk, shape, jnp.float32, -k, k)
    return {
        'w_ih': u(keys[0], (4 * H, D)),     # weight_ih_l0
        'w_hh': u(keys[1], (4 * H, H)),     # weight_hh_l0
        'b_ih': u(keys[2], (4 * H,)),       # bias_ih_l0
        'b_hh': u(keys[3], (4 * H,)),       # bias_hh_l0
        'w_proj': u(keys[4], (D, H)),       # proj.weight (no bias)
    }


if __name__ == "__main__":
    key = jax.random.PRNGKey(0)
    k_x, k_p = jax.random.split(key)

    batch, seq, inp_dim, n_hidden = 2, 8, 16, 32
    x = jax.random.normal(k_x, (batch, seq, inp_dim), jnp.float32)
    params = init_params(k_p, inp_dim, n_hidden)

    def run_forward(compute_dtype):
        try:
            fwd = jax.jit(functools.partial(
                cpc_minion_forward, compute_dtype=compute_dtype))
            out = fwd(x, params)
            return jax.block_until_ready(out)
        except (pltpu.LoweringException, NotImplementedError,
                ValueError, TypeError):
            # Narrow fallback: retry with default (double-buffered) weight
            # pipelining if single-buffered weights are rejected by this build.
            fwd = jax.jit(functools.partial(
                cpc_minion_forward, compute_dtype=compute_dtype,
                single_buffer_weights=False))
            out = fwd(x, params)
            return jax.block_until_ready(out)

    ref_inp, ref_proj = _reference_forward(x, params)

    # f32 path (exact semantics of the PyTorch module).
    inp_out, proj_out = run_forward(jnp.float32)
    assert inp_out.shape == (batch, seq, inp_dim)
    assert proj_out.shape == (batch, seq, inp_dim)
    assert jnp.allclose(inp_out, ref_inp)
    assert jnp.allclose(proj_out, ref_proj, atol=1e-4, rtol=1e-4)

    # Default bf16 compute path (MXU-friendly; accumulation/gate math stay f32).
    _, proj_bf16 = run_forward(jnp.bfloat16)
    assert proj_bf16.shape == (batch, seq, inp_dim)
    assert jnp.allclose(proj_bf16, ref_proj, atol=1e-1, rtol=1e-1)

    print("KERNEL_OK")
</pallas_src>

<mosaic_0001>
module attributes {stable_mosaic.version = 11 : i64} {
  func.func @_cpc_lstm_chunk_kernel(%arg0: i32, %arg1: memref<8x8x16xf32, #tpu.memory_space<vmem>>, %arg2: memref<16x512xf32, #tpu.memory_space<vmem>>, %arg3: memref<1x512xf32, #tpu.memory_space<vmem>>, %arg4: memref<128x512xf32, #tpu.memory_space<vmem>>, %arg5: memref<128x128xf32, #tpu.memory_space<vmem>>, %arg6: memref<8x8x128xf32, #tpu.memory_space<vmem>>, %arg7: memref<8x128xf32, #tpu.memory_space<vmem>>, %arg8: memref<8x128xf32, #tpu.memory_space<vmem>>, %arg9: memref<8x8x512xf32, #tpu.memory_space<vmem>>, %arg10: memref<8x8x128xf32, #tpu.memory_space<vmem>>) attributes {dimension_semantics = [#tpu.dimension_semantics<arbitrary>], iteration_bounds = array<i64: 1>, scalar_prefetch = 0 : i64, scratch_operands = 4 : i64, tpu.core_type = #tpu.core_type<tc>, window_params = [{transform_indices = @transform_0, window_bounds = array<i64: 8, 8, 16>}, {pipeline_mode = #tpu.pipeline_mode<synchronous>, transform_indices = @transform_1, window_bounds = array<i64: 16, 512>}, {pipeline_mode = #tpu.pipeline_mode<synchronous>, transform_indices = @transform_2, window_bounds = array<i64: 1, 512>}, {pipeline_mode = #tpu.pipeline_mode<synchronous>, transform_indices = @transform_3, window_bounds = array<i64: 128, 512>}, {pipeline_mode = #tpu.pipeline_mode<synchronous>, transform_indices = @transform_4, window_bounds = array<i64: 128, 128>}, {transform_indices = @transform_5, window_bounds = array<i64: 8, 8, 128>}]} {
    %c0_i32 = arith.constant 0 : i32
    %0 = arith.cmpi eq, %arg0, %c0_i32 : i32
    %1 = arith.extui %0 : i1 to i32
    %c0_i32_0 = arith.constant 0 : i32
    %2 = arith.cmpi ne, %1, %c0_i32_0 : i32
    scf.if %2 {
      %cst_94 = arith.constant 0.000000e+00 : f32
      %295 = vector.broadcast %cst_94 : f32 to vector<8x128xf32>
      %c0_95 = arith.constant 0 : index
      %c0_96 = arith.constant 0 : index
      %296 = vector.load %arg7[%c0_95, %c0_96] : memref<8x128xf32, #tpu.memory_space<vmem>>, vector<8x128xf32>
      tpu.vector_store %arg7[%c0_95, %c0_96], %295 {strides = array<i32>} : memref<8x128xf32, #tpu.memory_space<vmem>>, vector<8x128xf32>,
      %cst_97 = arith.constant 0.000000e+00 : f32
      %297 = vector.broadcast %cst_97 : f32 to vector<8x128xf32>
      %c0_98 = arith.constant 0 : index
      %c0_99 = arith.constant 0 : index
      %298 = vector.load %arg8[%c0_98, %c0_99] : memref<8x128xf32, #tpu.memory_space<vmem>>, vector<8x128xf32>
      tpu.vector_store %arg8[%c0_98, %c0_99], %297 {strides = array<i32>} : memref<8x128xf32, #tpu.memory_space<vmem>>, vector<8x128xf32>,
    } else {
    }
    %c0 = arith.constant 0 : index
    %c0_1 = arith.constant 0 : index
    %c0_2 = arith.constant 0 : index
    %3 = vector.load %arg1[%c0, %c0_1, %c0_2] : memref<8x8x16xf32, #tpu.memory_space<vmem>>, vector<8x8x16xf32>
    %4 = vector.shape_cast %3 : vector<8x8x16xf32> to vector<64x16xf32>
    %c0_3 = arith.constant 0 : index
    %c0_4 = arith.constant 0 : index
    %5 = vector.load %arg2[%c0_3, %c0_4] : memref<16x512xf32, #tpu.memory_space<vmem>>, vector<16x512xf32>
    %cst = arith.constant dense<0.000000e+00> : vector<64x512xf32>
    %6 = tpu.matmul %4, %5, %cst {dimension_numbers = #tpu.dot_dimension_numbers<[1], [0], [0], [1], [0, 0, 1, 1], [], []>} : vector<64x16xf32>, vector<16x512xf32>, vector<64x512xf32> -> vector<64x512xf32>
    %c0_5 = arith.constant 0 : index
    %c0_6 = arith.constant 0 : index
    %7 = vector.load %arg3[%c0_5, %c0_6] : memref<1x512xf32, #tpu.memory_space<vmem>>, vector<1x512xf32>
    %8 = vector.broadcast %7 : vector<1x512xf32> to vector<64x512xf32>
    %9 = arith.addf %6, %8 : vector<64x512xf32>
    %10 = vector.shape_cast %9 : vector<64x512xf32> to vector<8x8x512xf32>
    %c0_7 = arith.constant 0 : index
    %c0_8 = arith.constant 0 : index
    %c0_9 = arith.constant 0 : index
    %11 = vector.load %arg9[%c0_7, %c0_8, %c0_9] : memref<8x8x512xf32, #tpu.memory_space<vmem>>, vector<8x8x512xf32>
    tpu.vector_store %arg9[%c0_7, %c0_8, %c0_9], %10 {strides = array<i32>} : memref<8x8x512xf32, #tpu.memory_space<vmem>>, vector<8x8x512xf32>,
    %c0_10 = arith.constant 0 : index
    %c0_11 = arith.constant 0 : index
    %12 = vector.load %arg4[%c0_10, %c0_11] : memref<128x512xf32, #tpu.memory_space<vmem>>, vector<128x512xf32>
    %c0_12 = arith.constant 0 : index
    %c0_13 = arith.constant 0 : index
    %13 = vector.load %arg7[%c0_12, %c0_13] : memref<8x128xf32, #tpu.memory_space<vmem>>, vector<8x128xf32>
    %c0_14 = arith.constant 0 : index
    %c0_15 = arith.constant 0 : index
    %14 = vector.load %arg8[%c0_14, %c0_15] : memref<8x128xf32, #tpu.memory_space<vmem>>, vector<8x128xf32>
    %c0_i32_16 = arith.constant 0 : i32
    %15 = arith.index_cast %c0_i32_16 : i32 to index
    %c0_17 = arith.constant 0 : index
    %c0_18 = arith.constant 0 : index
    %16 = vector.load %arg9[%15, %c0_17, %c0_18] : memref<8x8x512xf32, #tpu.memory_space<vmem>>, vector<1x8x512xf32>
    %17 = vector.shape_cast %16 : vector<1x8x512xf32> to vector<8x512xf32>
    %cst_19 = arith.constant dense<0.000000e+00> : vector<8x512xf32>
    %18 = tpu.matmul %13, %12, %cst_19 {dimension_numbers = #tpu.dot_dimension_numbers<[1], [0], [0], [1], [0, 0, 1, 1], [], []>} : vector<8x128xf32>, vector<128x512xf32>, vector<8x512xf32> -> vector<8x512xf32>
    %19 = arith.addf %17, %18 : vector<8x512xf32>
    %20 = vector.extract_strided_slice %19 {offsets = [0, 0], sizes = [8, 128], strides = [1, 1]} : vector<8x512xf32> to vector<8x128xf32>
    %21 = arith.negf %20 : vector<8x128xf32>
    %22 = math.exp %21 : vector<8x128xf32>
    %cst_20 = arith.constant 1.000000e+00 : f32
    %23 = vector.broadcast %cst_20 : f32 to vector<8x128xf32>
    %24 = arith.addf %23, %22 : vector<8x128xf32>
    %25 = arith.divf %23, %24 : vector<8x128xf32>
    %26 = vector.extract_strided_slice %19 {offsets = [0, 128], sizes = [8, 128], strides = [1, 1]} : vector<8x512xf32> to vector<8x128xf32>
    %27 = arith.negf %26 : vector<8x128xf32>
    %28 = math.exp %27 : vector<8x128xf32>
    %cst_21 = arith.constant 1.000000e+00 : f32
    %29 = vector.broadcast %cst_21 : f32 to vector<8x128xf32>
    %30 = arith.addf %29, %28 : vector<8x128xf32>
    %31 = arith.divf %29, %30 : vector<8x128xf32>
    %32 = vector.extract_strided_slice %19 {offsets = [0, 256], sizes = [8, 128], strides = [1, 1]} : vector<8x512xf32> to vector<8x128xf32>
    %33 = math.tanh %32 : vector<8x128xf32>
    %34 = vector.extract_strided_slice %19 {offsets = [0, 384], sizes = [8, 128], strides = [1, 1]} : vector<8x512xf32> to vector<8x128xf32>
    %35 = arith.negf %34 : vector<8x128xf32>
    %36 = math.exp %35 : vector<8x128xf32>
    %cst_22 = arith.constant 1.000000e+00 : f32
    %37 = vector.broadcast %cst_22 : f32 to vector<8x128xf32>
    %38 = arith.addf %37, %36 : vector<8x128xf32>
    %39 = arith.divf %37, %38 : vector<8x128xf32>
    %40 = arith.mulf %31, %14 : vector<8x128xf32>
    %41 = arith.mulf %25, %33 : vector<8x128xf32>
    %42 = arith.addf %40, %41 : vector<8x128xf32>
    %43 = math.tanh %42 : vector<8x128xf32>
    %44 = arith.mulf %39, %43 : vector<8x128xf32>
    %45 = arith.index_cast %c0_i32_16 : i32 to index
    %c0_23 = arith.constant 0 : index
    %c0_24 = arith.constant 0 : index
    %46 = vector.load %arg10[%45, %c0_23, %c0_24] : memref<8x8x128xf32, #tpu.memory_space<vmem>>, vector<1x8x128xf32>
    %47 = vector.shape_cast %46 : vector<1x8x128xf32> to vector<8x128xf32>
    %48 = vector.shape_cast %44 : vector<8x128xf32> to vector<1x8x128xf32>
    tpu.vector_store %arg10[%45, %c0_23, %c0_24], %48 {strides = array<i32>} : memref<8x8x128xf32, #tpu.memory_space<vmem>>, vector<1x8x128xf32>,
    %c1_i32 = arith.constant 1 : i32
    %49 = arith.index_cast %c1_i32 : i32 to index
    %c0_25 = arith.constant 0 : index
    %c0_26 = arith.constant 0 : index
    %50 = vector.load %arg9[%49, %c0_25, %c0_26] : memref<8x8x512xf32, #tpu.memory_space<vmem>>, vector<1x8x512xf32>
    %51 = vector.shape_cast %50 : vector<1x8x512xf32> to vector<8x512xf32>
    %cst_27 = arith.constant dense<0.000000e+00> : vector<8x512xf32>
    %52 = tpu.matmul %44, %12, %cst_27 {dimension_numbers = #tpu.dot_dimension_numbers<[1], [0], [0], [1], [0, 0, 1, 1], [], []>} : vector<8x128xf32>, vector<128x512xf32>, vector<8x512xf32> -> vector<8x512xf32>
    %53 = arith.addf %51, %52 : vector<8x512xf32>
    %54 = vector.extract_strided_slice %53 {offsets = [0, 0], sizes = [8, 128], strides = [1, 1]} : vector<8x512xf32> to vector<8x128xf32>
    %55 = arith.negf %54 : vector<8x128xf32>
    %56 = math.exp %55 : vector<8x128xf32>
    %cst_28 = arith.constant 1.000000e+00 : f32
    %57 = vector.broadcast %cst_28 : f32 to vector<8x128xf32>
    %58 = arith.addf %57, %56 : vector<8x128xf32>
    %59 = arith.divf %57, %58 : vector<8x128xf32>
    %60 = vector.extract_strided_slice %53 {offsets = [0, 128], sizes = [8, 128], strides = [1, 1]} : vector<8x512xf32> to vector<8x128xf32>
    %61 = arith.negf %60 : vector<8x128xf32>
    %62 = math.exp %61 : vector<8x128xf32>
    %cst_29 = arith.constant 1.000000e+00 : f32
    %63 = vector.broadcast %cst_29 : f32 to vector<8x128xf32>
    %64 = arith.addf %63, %62 : vector<8x128xf32>
    %65 = arith.divf %63, %64 : vector<8x128xf32>
    %66 = vector.extract_strided_slice %53 {offsets = [0, 256], sizes = [8, 128], strides = [1, 1]} : vector<8x512xf32> to vector<8x128xf32>
    %67 = math.tanh %66 : vector<8x128xf32>
    %68 = vector.extract_strided_slice %53 {offsets = [0, 384], sizes = [8, 128], strides = [1, 1]} : vector<8x512xf32> to vector<8x128xf32>
    %69 = arith.negf %68 : vector<8x128xf32>
    %70 = math.exp %69 : vector<8x128xf32>
    %cst_30 = arith.constant 1.000000e+00 : f32
    %71 = vector.broadcast %cst_30 : f32 to vector<8x128xf32>
    %72 = arith.addf %71, %70 : vector<8x128xf32>
    %73 = arith.divf %71, %72 : vector<8x128xf32>
    %74 = arith.mulf %65, %42 : vector<8x128xf32>
    %75 = arith.mulf %59, %67 : vector<8x128xf32>
    %76 = arith.addf %74, %75 : vector<8x128xf32>
    %77 = math.tanh %76 : vector<8x128xf32>
    %78 = arith.mulf %73, %77 : vector<8x128xf32>
    %79 = arith.index_cast %c1_i32 : i32 to index
    %c0_31 = arith.constant 0 : index
    %c0_32 = arith.constant 0 : index
    %80 = vector.load %arg10[%79, %c0_31, %c0_32] : memref<8x8x128xf32, #tpu.memory_space<vmem>>, vector<1x8x128xf32>
    %81 = vector.shape_cast %80 : vector<1x8x128xf32> to vector<8x128xf32>
    %82 = vector.shape_cast %78 : vector<8x128xf32> to vector<1x8x128xf32>
    tpu.vector_store %arg10[%79, %c0_31, %c0_32], %82 {strides = array<i32>} : memref<8x8x128xf32, #tpu.memory_space<vmem>>, vector<1x8x128xf32>,
    %c2_i32 = arith.constant 2 : i32
    %83 = arith.index_cast %c2_i32 : i32 to index
    %c0_33 = arith.constant 0 : index
    %c0_34 = arith.constant 0 : index
    %84 = vector.load %arg9[%83, %c0_33, %c0_34] : memref<8x8x512xf32, #tpu.memory_space<vmem>>, vector<1x8x512xf32>
    %85 = vector.shape_cast %84 : vector<1x8x512xf32> to vector<8x512xf32>
    %cst_35 = arith.constant dense<0.000000e+00> : vector<8x512xf32>
    %86 = tpu.matmul %78, %12, %cst_35 {dimension_numbers = #tpu.dot_dimension_numbers<[1], [0], [0], [1], [0, 0, 1, 1], [], []>} : vector<8x128xf32>, vector<128x512xf32>, vector<8x512xf32> -> vector<8x512xf32>
    %87 = arith.addf %85, %86 : vector<8x512xf32>
    %88 = vector.extract_strided_slice %87 {offsets = [0, 0], sizes = [8, 128], strides = [1, 1]} : vector<8x512xf32> to vector<8x128xf32>
    %89 = arith.negf %88 : vector<8x128xf32>
    %90 = math.exp %89 : vector<8x128xf32>
    %cst_36 = arith.constant 1.000000e+00 : f32
    %91 = vector.broadcast %cst_36 : f32 to vector<8x128xf32>
    %92 = arith.addf %91, %90 : vector<8x128xf32>
    %93 = arith.divf %91, %92 : vector<8x128xf32>
    %94 = vector.extract_strided_slice %87 {offsets = [0, 128], sizes = [8, 128], strides = [1, 1]} : vector<8x512xf32> to vector<8x128xf32>
    %95 = arith.negf %94 : vector<8x128xf32>
    %96 = math.exp %95 : vector<8x128xf32>
    %cst_37 = arith.constant 1.000000e+00 : f32
    %97 = vector.broadcast %cst_37 : f32 to vector<8x128xf32>
    %98 = arith.addf %97, %96 : vector<8x128xf32>
    %99 = arith.divf %97, %98 : vector<8x128xf32>
    %100 = vector.extract_strided_slice %87 {offsets = [0, 256], sizes = [8, 128], strides = [1, 1]} : vector<8x512xf32> to vector<8x128xf32>
    %101 = math.tanh %100 : vector<8x128xf32>
    %102 = vector.extract_strided_slice %87 {offsets = [0, 384], sizes = [8, 128], strides = [1, 1]} : vector<8x512xf32> to vector<8x128xf32>
    %103 = arith.negf %102 : vector<8x128xf32>
    %104 = math.exp %103 : vector<8x128xf32>
    %cst_38 = arith.constant 1.000000e+00 : f32
    %105 = vector.broadcast %cst_38 : f32 to vector<8x128xf32>
    %106 = arith.addf %105, %104 : vector<8x128xf32>
    %107 = arith.divf %105, %106 : vector<8x128xf32>
    %108 = arith.mulf %99, %76 : vector<8x128xf32>
    %109 = arith.mulf %93, %101 : vector<8x128xf32>
    %110 = arith.addf %108, %109 : vector<8x128xf32>
    %111 = math.tanh %110 : vector<8x128xf32>
    %112 = arith.mulf %107, %111 : vector<8x128xf32>
    %113 = arith.index_cast %c2_i32 : i32 to index
    %c0_39 = arith.constant 0 : index
    %c0_40 = arith.constant 0 : index
    %114 = vector.load %arg10[%113, %c0_39, %c0_40] : memref<8x8x128xf32, #tpu.memory_space<vmem>>, vector<1x8x128xf32>
    %115 = vector.shape_cast %114 : vector<1x8x128xf32> to vector<8x128xf32>
    %116 = vector.shape_cast %112 : vector<8x128xf32> to vector<1x8x128xf32>
    tpu.vector_store %arg10[%113, %c0_39, %c0_40], %116 {strides = array<i32>} : memref<8x8x128xf32, #tpu.memory_space<vmem>>, vector<1x8x128xf32>,
    %c3_i32 = arith.constant 3 : i32
    %117 = arith.index_cast %c3_i32 : i32 to index
    %c0_41 = arith.constant 0 : index
    %c0_42 = arith.constant 0 : index
    %118 = vector.load %arg9[%117, %c0_41, %c0_42] : memref<8x8x512xf32, #tpu.memory_space<vmem>>, vector<1x8x512xf32>
    %119 = vector.shape_cast %118 : vector<1x8x512xf32> to vector<8x512xf32>
    %cst_43 = arith.constant dense<0.000000e+00> : vector<8x512xf32>
    %120 = tpu.matmul %112, %12, %cst_43 {dimension_numbers = #tpu.dot_dimension_numbers<[1], [0], [0], [1], [0, 0, 1, 1], [], []>} : vector<8x128xf32>, vector<128x512xf32>, vector<8x512xf32> -> vector<8x512xf32>
    %121 = arith.addf %119, %120 : vector<8x512xf32>
    %122 = vector.extract_strided_slice %121 {offsets = [0, 0], sizes = [8, 128], strides = [1, 1]} : vector<8x512xf32> to vector<8x128xf32>
    %123 = arith.negf %122 : vector<8x128xf32>
    %124 = math.exp %123 : vector<8x128xf32>
    %cst_44 = arith.constant 1.000000e+00 : f32
    %125 = vector.broadcast %cst_44 : f32 to vector<8x128xf32>
    %126 = arith.addf %125, %124 : vector<8x128xf32>
    %127 = arith.divf %125, %126 : vector<8x128xf32>
    %128 = vector.extract_strided_slice %121 {offsets = [0, 128], sizes = [8, 128], strides = [1, 1]} : vector<8x512xf32> to vector<8x128xf32>
    %129 = arith.negf %128 : vector<8x128xf32>
    %130 = math.exp %129 : vector<8x128xf32>
    %cst_45 = arith.constant 1.000000e+00 : f32
    %131 = vector.broadcast %cst_45 : f32 to vector<8x128xf32>
    %132 = arith.addf %131, %130 : vector<8x128xf32>
    %133 = arith.divf %131, %132 : vector<8x128xf32>
    %134 = vector.extract_strided_slice %121 {offsets = [0, 256], sizes = [8, 128], strides = [1, 1]} : vector<8x512xf32> to vector<8x128xf32>
    %135 = math.tanh %134 : vector<8x128xf32>
    %136 = vector.extract_strided_slice %121 {offsets = [0, 384], sizes = [8, 128], strides = [1, 1]} : vector<8x512xf32> to vector<8x128xf32>
    %137 = arith.negf %136 : vector<8x128xf32>
    %138 = math.exp %137 : vector<8x128xf32>
    %cst_46 = arith.constant 1.000000e+00 : f32
    %139 = vector.broadcast %cst_46 : f32 to vector<8x128xf32>
    %140 = arith.addf %139, %138 : vector<8x128xf32>
    %141 = arith.divf %139, %140 : vector<8x128xf32>
    %142 = arith.mulf %133, %110 : vector<8x128xf32>
    %143 = arith.mulf %127, %135 : vector<8x128xf32>
    %144 = arith.addf %142, %143 : vector<8x128xf32>
    %145 = math.tanh %144 : vector<8x128xf32>
    %146 = arith.mulf %141, %145 : vector<8x128xf32>
    %147 = arith.index_cast %c3_i32 : i32 to index
    %c0_47 = arith.constant 0 : index
    %c0_48 = arith.constant 0 : index
    %148 = vector.load %arg10[%147, %c0_47, %c0_48] : memref<8x8x128xf32, #tpu.memory_space<vmem>>, vector<1x8x128xf32>
    %149 = vector.shape_cast %148 : vector<1x8x128xf32> to vector<8x128xf32>
    %150 = vector.shape_cast %146 : vector<8x128xf32> to vector<1x8x128xf32>
    tpu.vector_store %arg10[%147, %c0_47, %c0_48], %150 {strides = array<i32>} : memref<8x8x128xf32, #tpu.memory_space<vmem>>, vector<1x8x128xf32>,
    %c4_i32 = arith.constant 4 : i32
    %151 = arith.index_cast %c4_i32 : i32 to index
    %c0_49 = arith.constant 0 : index
    %c0_50 = arith.constant 0 : index
    %152 = vector.load %arg9[%151, %c0_49, %c0_50] : memref<8x8x512xf32, #tpu.memory_space<vmem>>, vector<1x8x512xf32>
    %153 = vector.shape_cast %152 : vector<1x8x512xf32> to vector<8x512xf32>
    %cst_51 = arith.constant dense<0.000000e+00> : vector<8x512xf32>
    %154 = tpu.matmul %146, %12, %cst_51 {dimension_numbers = #tpu.dot_dimension_numbers<[1], [0], [0], [1], [0, 0, 1, 1], [], []>} : vector<8x128xf32>, vector<128x512xf32>, vector<8x512xf32> -> vector<8x512xf32>
    %155 = arith.addf %153, %154 : vector<8x512xf32>
    %156 = vector.extract_strided_slice %155 {offsets = [0, 0], sizes = [8, 128], strides = [1, 1]} : vector<8x512xf32> to vector<8x128xf32>
    %157 = arith.negf %156 : vector<8x128xf32>
    %158 = math.exp %157 : vector<8x128xf32>
    %cst_52 = arith.constant 1.000000e+00 : f32
    %159 = vector.broadcast %cst_52 : f32 to vector<8x128xf32>
    %160 = arith.addf %159, %158 : vector<8x128xf32>
    %161 = arith.divf %159, %160 : vector<8x128xf32>
    %162 = vector.extract_strided_slice %155 {offsets = [0, 128], sizes = [8, 128], strides = [1, 1]} : vector<8x512xf32> to vector<8x128xf32>
    %163 = arith.negf %162 : vector<8x128xf32>
    %164 = math.exp %163 : vector<8x128xf32>
    %cst_53 = arith.constant 1.000000e+00 : f32
    %165 = vector.broadcast %cst_53 : f32 to vector<8x128xf32>
    %166 = arith.addf %165, %164 : vector<8x128xf32>
    %167 = arith.divf %165, %166 : vector<8x128xf32>
    %168 = vector.extract_strided_slice %155 {offsets = [0, 256], sizes = [8, 128], strides = [1, 1]} : vector<8x512xf32> to vector<8x128xf32>
    %169 = math.tanh %168 : vector<8x128xf32>
    %170 = vector.extract_strided_slice %155 {offsets = [0, 384], sizes = [8, 128], strides = [1, 1]} : vector<8x512xf32> to vector<8x128xf32>
    %171 = arith.negf %170 : vector<8x128xf32>
    %172 = math.exp %171 : vector<8x128xf32>
    %cst_54 = arith.constant 1.000000e+00 : f32
    %173 = vector.broadcast %cst_54 : f32 to vector<8x128xf32>
    %174 = arith.addf %173, %172 : vector<8x128xf32>
    %175 = arith.divf %173, %174 : vector<8x128xf32>
    %176 = arith.mulf %167, %144 : vector<8x128xf32>
    %177 = arith.mulf %161, %169 : vector<8x128xf32>
    %178 = arith.addf %176, %177 : vector<8x128xf32>
    %179 = math.tanh %178 : vector<8x128xf32>
    %180 = arith.mulf %175, %179 : vector<8x128xf32>
    %181 = arith.index_cast %c4_i32 : i32 to index
    %c0_55 = arith.constant 0 : index
    %c0_56 = arith.constant 0 : index
    %182 = vector.load %arg10[%181, %c0_55, %c0_56] : memref<8x8x128xf32, #tpu.memory_space<vmem>>, vector<1x8x128xf32>
    %183 = vector.shape_cast %182 : vector<1x8x128xf32> to vector<8x128xf32>
    %184 = vector.shape_cast %180 : vector<8x128xf32> to vector<1x8x128xf32>
    tpu.vector_store %arg10[%181, %c0_55, %c0_56], %184 {strides = array<i32>} : memref<8x8x128xf32, #tpu.memory_space<vmem>>, vector<1x8x128xf32>,
    %c5_i32 = arith.constant 5 : i32
    %185 = arith.index_cast %c5_i32 : i32 to index
    %c0_57 = arith.constant 0 : index
    %c0_58 = arith.constant 0 : index
    %186 = vector.load %arg9[%185, %c0_57, %c0_58] : memref<8x8x512xf32, #tpu.memory_space<vmem>>, vector<1x8x512xf32>
    %187 = vector.shape_cast %186 : vector<1x8x512xf32> to vector<8x512xf32>
    %cst_59 = arith.constant dense<0.000000e+00> : vector<8x512xf32>
    %188 = tpu.matmul %180, %12, %cst_59 {dimension_numbers = #tpu.dot_dimension_numbers<[1], [0], [0], [1], [0, 0, 1, 1], [], []>} : vector<8x128xf32>, vector<128x512xf32>, vector<8x512xf32> -> vector<8x512xf32>
    %189 = arith.addf %187, %188 : vector<8x512xf32>
    %190 = vector.extract_strided_slice %189 {offsets = [0, 0], sizes = [8, 128], strides = [1, 1]} : vector<8x512xf32> to vector<8x128xf32>
    %191 = arith.negf %190 : vector<8x128xf32>
    %192 = math.exp %191 : vector<8x128xf32>
    %cst_60 = arith.constant 1.000000e+00 : f32
    %193 = vector.broadcast %cst_60 : f32 to vector<8x128xf32>
    %194 = arith.addf %193, %192 : vector<8x128xf32>
    %195 = arith.divf %193, %194 : vector<8x128xf32>
    %196 = vector.extract_strided_slice %189 {offsets = [0, 128], sizes = [8, 128], strides = [1, 1]} : vector<8x512xf32> to vector<8x128xf32>
    %197 = arith.negf %196 : vector<8x128xf32>
    %198 = math.exp %197 : vector<8x128xf32>
    %cst_61 = arith.constant 1.000000e+00 : f32
    %199 = vector.broadcast %cst_61 : f32 to vector<8x128xf32>
    %200 = arith.addf %199, %198 : vector<8x128xf32>
    %201 = arith.divf %199, %200 : vector<8x128xf32>
    %202 = vector.extract_strided_slice %189 {offsets = [0, 256], sizes = [8, 128], strides = [1, 1]} : vector<8x512xf32> to vector<8x128xf32>
    %203 = math.tanh %202 : vector<8x128xf32>
    %204 = vector.extract_strided_slice %189 {offsets = [0, 384], sizes = [8, 128], strides = [1, 1]} : vector<8x512xf32> to vector<8x128xf32>
    %205 = arith.negf %204 : vector<8x128xf32>
    %206 = math.exp %205 : vector<8x128xf32>
    %cst_62 = arith.constant 1.000000e+00 : f32
    %207 = vector.broadcast %cst_62 : f32 to vector<8x128xf32>
    %208 = arith.addf %207, %206 : vector<8x128xf32>
    %209 = arith.divf %207, %208 : vector<8x128xf32>
    %210 = arith.mulf %201, %178 : vector<8x128xf32>
    %211 = arith.mulf %195, %203 : vector<8x128xf32>
    %212 = arith.addf %210, %211 : vector<8x128xf32>
    %213 = math.tanh %212 : vector<8x128xf32>
    %214 = arith.mulf %209, %213 : vector<8x128xf32>
    %215 = arith.index_cast %c5_i32 : i32 to index
    %c0_63 = arith.constant 0 : index
    %c0_64 = arith.constant 0 : index
    %216 = vector.load %arg10[%215, %c0_63, %c0_64] : memref<8x8x128xf32, #tpu.memory_space<vmem>>, vector<1x8x128xf32>
    %217 = vector.shape_cast %216 : vector<1x8x128xf32> to vector<8x128xf32>
    %218 = vector.shape_cast %214 : vector<8x128xf32> to vector<1x8x128xf32>
    tpu.vector_store %arg10[%215, %c0_63, %c0_64], %218 {strides = array<i32>} : memref<8x8x128xf32, #tpu.memory_space<vmem>>, vector<1x8x128xf32>,
    %c6_i32 = arith.constant 6 : i32
    %219 = arith.index_cast %c6_i32 : i32 to index
    %c0_65 = arith.constant 0 : index
    %c0_66 = arith.constant 0 : index
    %220 = vector.load %arg9[%219, %c0_65, %c0_66] : memref<8x8x512xf32, #tpu.memory_space<vmem>>, vector<1x8x512xf32>
    %221 = vector.shape_cast %220 : vector<1x8x512xf32> to vector<8x512xf32>
    %cst_67 = arith.constant dense<0.000000e+00> : vector<8x512xf32>
    %222 = tpu.matmul %214, %12, %cst_67 {dimension_numbers = #tpu.dot_dimension_numbers<[1], [0], [0], [1], [0, 0, 1, 1], [], []>} : vector<8x128xf32>, vector<128x512xf32>, vector<8x512xf32> -> vector<8x512xf32>
    %223 = arith.addf %221, %222 : vector<8x512xf32>
    %224 = vector.extract_strided_slice %223 {offsets = [0, 0], sizes = [8, 128], strides = [1, 1]} : vector<8x512xf32> to vector<8x128xf32>
    %225 = arith.negf %224 : vector<8x128xf32>
    %226 = math.exp %225 : vector<8x128xf32>
    %cst_68 = arith.constant 1.000000e+00 : f32
    %227 = vector.broadcast %cst_68 : f32 to vector<8x128xf32>
    %228 = arith.addf %227, %226 : vector<8x128xf32>
    %229 = arith.divf %227, %228 : vector<8x128xf32>
    %230 = vector.extract_strided_slice %223 {offsets = [0, 128], sizes = [8, 128], strides = [1, 1]} : vector<8x512xf32> to vector<8x128xf32>
    %231 = arith.negf %230 : vector<8x128xf32>
    %232 = math.exp %231 : vector<8x128xf32>
    %cst_69 = arith.constant 1.000000e+00 : f32
    %233 = vector.broadcast %cst_69 : f32 to vector<8x128xf32>
    %234 = arith.addf %233, %232 : vector<8x128xf32>
    %235 = arith.divf %233, %234 : vector<8x128xf32>
    %236 = vector.extract_strided_slice %223 {offsets = [0, 256], sizes = [8, 128], strides = [1, 1]} : vector<8x512xf32> to vector<8x128xf32>
    %237 = math.tanh %236 : vector<8x128xf32>
    %238 = vector.extract_strided_slice %223 {offsets = [0, 384], sizes = [8, 128], strides = [1, 1]} : vector<8x512xf32> to vector<8x128xf32>
    %239 = arith.negf %238 : vector<8x128xf32>
    %240 = math.exp %239 : vector<8x128xf32>
    %cst_70 = arith.constant 1.000000e+00 : f32
    %241 = vector.broadcast %cst_70 : f32 to vector<8x128xf32>
    %242 = arith.addf %241, %240 : vector<8x128xf32>
    %243 = arith.divf %241, %242 : vector<8x128xf32>
    %244 = arith.mulf %235, %212 : vector<8x128xf32>
    %245 = arith.mulf %229, %237 : vector<8x128xf32>
    %246 = arith.addf %244, %245 : vector<8x128xf32>
    %247 = math.tanh %246 : vector<8x128xf32>
    %248 = arith.mulf %243, %247 : vector<8x128xf32>
    %249 = arith.index_cast %c6_i32 : i32 to index
    %c0_71 = arith.constant 0 : index
    %c0_72 = arith.constant 0 : index
    %250 = vector.load %arg10[%249, %c0_71, %c0_72] : memref<8x8x128xf32, #tpu.memory_space<vmem>>, vector<1x8x128xf32>
    %251 = vector.shape_cast %250 : vector<1x8x128xf32> to vector<8x128xf32>
    %252 = vector.shape_cast %248 : vector<8x128xf32> to vector<1x8x128xf32>
    tpu.vector_store %arg10[%249, %c0_71, %c0_72], %252 {strides = array<i32>} : memref<8x8x128xf32, #tpu.memory_space<vmem>>, vector<1x8x128xf32>,
    %c7_i32 = arith.constant 7 : i32
    %253 = arith.index_cast %c7_i32 : i32 to index
    %c0_73 = arith.constant 0 : index
    %c0_74 = arith.constant 0 : index
    %254 = vector.load %arg9[%253, %c0_73, %c0_74] : memref<8x8x512xf32, #tpu.memory_space<vmem>>, vector<1x8x512xf32>
    %255 = vector.shape_cast %254 : vector<1x8x512xf32> to vector<8x512xf32>
    %cst_75 = arith.constant dense<0.000000e+00> : vector<8x512xf32>
    %256 = tpu.matmul %248, %12, %cst_75 {dimension_numbers = #tpu.dot_dimension_numbers<[1], [0], [0], [1], [0, 0, 1, 1], [], []>} : vector<8x128xf32>, vector<128x512xf32>, vector<8x512xf32> -> vector<8x512xf32>
    %257 = arith.addf %255, %256 : vector<8x512xf32>
    %258 = vector.extract_strided_slice %257 {offsets = [0, 0], sizes = [8, 128], strides = [1, 1]} : vector<8x512xf32> to vector<8x128xf32>
    %259 = arith.negf %258 : vector<8x128xf32>
    %260 = math.exp %259 : vector<8x128xf32>
    %cst_76 = arith.constant 1.000000e+00 : f32
    %261 = vector.broadcast %cst_76 : f32 to vector<8x128xf32>
    %262 = arith.addf %261, %260 : vector<8x128xf32>
    %263 = arith.divf %261, %262 : vector<8x128xf32>
    %264 = vector.extract_strided_slice %257 {offsets = [0, 128], sizes = [8, 128], strides = [1, 1]} : vector<8x512xf32> to vector<8x128xf32>
    %265 = arith.negf %264 : vector<8x128xf32>
    %266 = math.exp %265 : vector<8x128xf32>
    %cst_77 = arith.constant 1.000000e+00 : f32
    %267 = vector.broadcast %cst_77 : f32 to vector<8x128xf32>
    %268 = arith.addf %267, %266 : vector<8x128xf32>
    %269 = arith.divf %267, %268 : vector<8x128xf32>
    %270 = vector.extract_strided_slice %257 {offsets = [0, 256], sizes = [8, 128], strides = [1, 1]} : vector<8x512xf32> to vector<8x128xf32>
    %271 = math.tanh %270 : vector<8x128xf32>
    %272 = vector.extract_strided_slice %257 {offsets = [0, 384], sizes = [8, 128], strides = [1, 1]} : vector<8x512xf32> to vector<8x128xf32>
    %273 = arith.negf %272 : vector<8x128xf32>
    %274 = math.exp %273 : vector<8x128xf32>
    %cst_78 = arith.constant 1.000000e+00 : f32
    %275 = vector.broadcast %cst_78 : f32 to vector<8x128xf32>
    %276 = arith.addf %275, %274 : vector<8x128xf32>
    %277 = arith.divf %275, %276 : vector<8x128xf32>
    %278 = arith.mulf %269, %246 : vector<8x128xf32>
    %279 = arith.mulf %263, %271 : vector<8x128xf32>
    %280 = arith.addf %278, %279 : vector<8x128xf32>
    %281 = math.tanh %280 : vector<8x128xf32>
    %282 = arith.mulf %277, %281 : vector<8x128xf32>
    %283 = arith.index_cast %c7_i32 : i32 to index
    %c0_79 = arith.constant 0 : index
    %c0_80 = arith.constant 0 : index
    %284 = vector.load %arg10[%283, %c0_79, %c0_80] : memref<8x8x128xf32, #tpu.memory_space<vmem>>, vector<1x8x128xf32>
    %285 = vector.shape_cast %284 : vector<1x8x128xf32> to vector<8x128xf32>
    %286 = vector.shape_cast %282 : vector<8x128xf32> to vector<1x8x128xf32>
    tpu.vector_store %arg10[%283, %c0_79, %c0_80], %286 {strides = array<i32>} : memref<8x8x128xf32, #tpu.memory_space<vmem>>, vector<1x8x128xf32>,
    %c8_i32 = arith.constant 8 : i32
    %c0_81 = arith.constant 0 : index
    %c0_82 = arith.constant 0 : index
    %287 = vector.load %arg7[%c0_81, %c0_82] : memref<8x128xf32, #tpu.memory_space<vmem>>, vector<8x128xf32>
    tpu.vector_store %arg7[%c0_81, %c0_82], %282 {strides = array<i32>} : memref<8x128xf32, #tpu.memory_space<vmem>>, vector<8x128xf32>,
    %c0_83 = arith.constant 0 : index
    %c0_84 = arith.constant 0 : index
    %288 = vector.load %arg8[%c0_83, %c0_84] : memref<8x128xf32, #tpu.memory_space<vmem>>, vector<8x128xf32>
    tpu.vector_store %arg8[%c0_83, %c0_84], %280 {strides = array<i32>} : memref<8x128xf32, #tpu.memory_space<vmem>>, vector<8x128xf32>,
    %c0_85 = arith.constant 0 : index
    %c0_86 = arith.constant 0 : index
    %c0_87 = arith.constant 0 : index
    %289 = vector.load %arg10[%c0_85, %c0_86, %c0_87] : memref<8x8x128xf32, #tpu.memory_space<vmem>>, vector<8x8x128xf32>
    %290 = vector.shape_cast %289 : vector<8x8x128xf32> to vector<64x128xf32>
    %c0_88 = arith.constant 0 : index
    %c0_89 = arith.constant 0 : index
    %291 = vector.load %arg5[%c0_88, %c0_89] : memref<128x128xf32, #tpu.memory_space<vmem>>, vector<128x128xf32>
    %cst_90 = arith.constant dense<0.000000e+00> : vector<64x128xf32>
    %292 = tpu.matmul %290, %291, %cst_90 {dimension_numbers = #tpu.dot_dimension_numbers<[1], [0], [0], [1], [0, 0, 1, 1], [], []>} : vector<64x128xf32>, vector<128x128xf32>, vector<64x128xf32> -> vector<64x128xf32>
    %293 = vector.shape_cast %292 : vector<64x128xf32> to vector<8x8x128xf32>
    %c0_91 = arith.constant 0 : index
    %c0_92 = arith.constant 0 : index
    %c0_93 = arith.constant 0 : index
    %294 = vector.load %arg6[%c0_91, %c0_92, %c0_93] : memref<8x8x128xf32, #tpu.memory_space<vmem>>, vector<8x8x128xf32>
    tpu.vector_store %arg6[%c0_91, %c0_92, %c0_93], %293 {strides = array<i32>} : memref<8x8x128xf32, #tpu.memory_space<vmem>>, vector<8x8x128xf32>,
    return
  }
  func.func @transform_0(%arg0: i32) -> (i32, i32, i32) {
    %c0_i32 = arith.constant 0 : i32
    %c0_i32_0 = arith.constant 0 : i32
    %c0_i32_1 = arith.constant 0 : i32
    return %arg0, %c0_i32, %c0_i32_0 : i32, i32, i32
  }
  func.func @transform_1(%arg0: i32) -> (i32, i32) {
    %c0_i32 = arith.constant 0 : i32
    %c0_i32_0 = arith.constant 0 : i32
    %c0_i32_1 = arith.constant 0 : i32
    return %c0_i32, %c0_i32_0 : i32, i32
  }
  func.func @transform_2(%arg0: i32) -> (i32, i32) {
    %c0_i32 = arith.constant 0 : i32
    %c0_i32_0 = arith.constant 0 : i32
    %c0_i32_1 = arith.constant 0 : i32
    return %c0_i32, %c0_i32_0 : i32, i32
  }
  func.func @transform_3(%arg0: i32) -> (i32, i32) {
    %c0_i32 = arith.constant 0 : i32
    %c0_i32_0 = arith.constant 0 : i32
    %c0_i32_1 = arith.constant 0 : i32
    return %c0_i32, %c0_i32_0 : i32, i32
  }
  func.func @transform_4(%arg0: i32) -> (i32, i32) {
    %c0_i32 = arith.constant 0 : i32
    %c0_i32_0 = arith.constant 0 : i32
    %c0_i32_1 = arith.constant 0 : i32
    return %c0_i32, %c0_i32_0 : i32, i32
  }
  func.func @transform_5(%arg0: i32) -> (i32, i32, i32) {
    %c0_i32 = arith.constant 0 : i32
    %c0_i32_0 = arith.constant 0 : i32
    %c0_i32_1 = arith.constant 0 : i32
    return %arg0, %c0_i32, %c0_i32_0 : i32, i32, i32
  }
}

</mosaic_0001>

<llo_original>
// kernel: cpc_minion_forward.1
$region0: #{cpc_minion_forward.1}
  #allocation0 [shape = 'u32[]', space=smem, size = 0x4, offset = 0x4, fixed_abs, tag = 'smem constant byte address 0x4 - core index']
  #allocation1 [shape = 'u32[72,128]{1,0:T(1,128)}', space=vmem, size = 0x9000, scoped, tag = 'internal scratch']
  #allocation2 [shape = 'f32[8,128]{1,0:T(8,128)}', space=vmem, size = 0x1000, scoped, tag = 'scratch operand']
  #allocation3 [shape = 'f32[8,128]{1,0:T(8,128)}', space=vmem, size = 0x1000, scoped, tag = 'scratch operand']
  #allocation4 [shape = 'f32[8,8,512]{2,1,0:T(8,128)}', space=vmem, size = 0x20000, scoped, tag = 'scratch operand']
  #allocation5 [shape = 'f32[8,8,128]{2,1,0:T(8,128)}', space=vmem, size = 0x8000, scoped, tag = 'scratch operand']
  %s0 = inlined_call_operand.vmem [shape: f32[8,8,16], index: 0, kind: input, shape index: {}]
  %s1 = inlined_call_operand.vmem [shape: f32[16,512], index: 1, kind: input, shape index: {}]
  %s2 = inlined_call_operand.vmem [shape: f32[1,512], index: 2, kind: input, shape index: {}]
  %s3 = inlined_call_operand.vmem [shape: f32[128,512], index: 3, kind: input, shape index: {}]
  %s4 = inlined_call_operand.vmem [shape: f32[128,128], index: 4, kind: input, shape index: {}]
  %s5 = inlined_call_operand.vmem [shape: f32[8,8,128], index: 5, kind: output, shape index: {}]
  %s6 = sld [smem:[#allocation0]]
  $region34: #{cpc_minion_forward.1} parent=0
    _
  %s8 = ssub.s32 1, %s6
  %s9 = scalar_select 0, %s8, %s6
  // Predicated region
  $region2: #{cpc_minion_forward.1} parent=0 // pred_check
    _
  $region3: #{cpc_minion_forward.1} parent=0 // pred_check_branch
    %11 = sbr.rel (0) target = $region5
  $region4: #{cpc_minion_forward.1} parent=0 // pred_region
    _
  $region5: #{cpc_minion_forward.1} parent=0 // pred_fallthru
    _
  // Predicated region
  $region6: #{cpc_minion_forward.1} parent=0 // pred_check
    _
  $region7: #{cpc_minion_forward.1} parent=0 // pred_check_branch
    %13 = sbr.rel (0) target = $region9
  $region8: #{cpc_minion_forward.1} parent=0 // pred_region
    _
  $region9: #{cpc_minion_forward.1} parent=0 // pred_fallthru
    _
  // Predicated region
  $region10: #{cpc_minion_forward.1} parent=0 // pred_check
    _
  $region11: #{cpc_minion_forward.1} parent=0 // pred_check_branch
    %15 = sbr.rel (0) target = $region13
  $region12: #{cpc_minion_forward.1} parent=0 // pred_region
    _
  $region13: #{cpc_minion_forward.1} parent=0 // pred_fallthru
    _
  // Predicated region
  $region14: #{cpc_minion_forward.1} parent=0 // pred_check
    _
  $region15: #{cpc_minion_forward.1} parent=0 // pred_check_branch
    %17 = sbr.rel (0) target = $region17
  $region16: #{cpc_minion_forward.1} parent=0 // pred_region
    _
  $region17: #{cpc_minion_forward.1} parent=0 // pred_fallthru
    _
  // Predicated region
  $region18: #{cpc_minion_forward.1} parent=0 // pred_check
    _
  $region19: #{cpc_minion_forward.1} parent=0 // pred_check_branch
    %19 = sbr.rel (0) target = $region21
  $region20: #{cpc_minion_forward.1} parent=0 // pred_region
    _
  $region21: #{cpc_minion_forward.1} parent=0 // pred_fallthru
    _
  %p20 = scmp.eq.s32.totalorder 0, 0
  // Predicated region
  $region22: #{cpc_minion_forward.1} parent=0 // pred_check
    %p21 = pneg %p20
  $region23: #{cpc_minion_forward.1} parent=0 // pred_check_branch
    %23 = sbr.rel (%p21) target = $region25
  $region24: #{cpc_minion_forward.1} parent=0 // pred_region
    %24 = vst [vmem:[#allocation2] sm:$0xff] 0.0
    %25 = vst [vmem:[#allocation3] sm:$0xff] 0.0
  $region25: #{cpc_minion_forward.1} parent=0 // pred_fallthru
    _
  %v26 = vld [vmem:[%s0] sm:$0xff]
  %v27 = vld [vmem:[%s0 + $0x8] sm:$0xff]
  %v28 = vld [vmem:[%s0 + $0x10] sm:$0xff]
  %v29 = vld [vmem:[%s0 + $0x18] sm:$0xff]
  %v30 = vld [vmem:[%s0 + $0x20] sm:$0xff]
  %v31 = vld [vmem:[%s0 + $0x28] sm:$0xff]
  %v32 = vld [vmem:[%s0 + $0x30] sm:$0xff]
  %v33 = vld [vmem:[%s0 + $0x38] sm:$0xff]
  %v34 = vld [vmem:[%s1] sm:$0xff]
  %v35 = vld [vmem:[%s1 + $0x8] sm:$0xff]
  %v36 = vld [vmem:[%s1 + $0x10] sm:$0xff]
  %v37 = vld [vmem:[%s1 + $0x18] sm:$0xff]
  %v38 = vld [vmem:[%s1 + $0x20] sm:$0xff]
  %v39 = vld [vmem:[%s1 + $0x28] sm:$0xff]
  %v40 = vld [vmem:[%s1 + $0x30] sm:$0xff]
  %v41 = vld [vmem:[%s1 + $0x38] sm:$0xff]
  %v42 = vld [vmem:[%s2] sm:$0xf]
  %v44 = vperm.slane %v42, 0
  %v45 = vperm.slane %v42, 1
  %v46 = vperm.slane %v42, 2
  %v47 = vperm.slane %v42, 3
  %vm52 = vcmask 130048
  %v54 = vsel %vm52, %v26, 0
  %v57 = vsel %vm52, %v27, 0
  %v60 = vsel %vm52, %v28, 0
  %v63 = vsel %vm52, %v29, 0
  %v66 = vsel %vm52, %v30, 0
  %v69 = vsel %vm52, %v31, 0
  %v72 = vsel %vm52, %v32, 0
  %v75 = vsel %vm52, %v33, 0
  %77 = vmatpush.msra.mxu0 0.0
  %78 = vmatpush.msra.mxu0 0.0
  %79 = vmatpush.msra.mxu0 0.0
  %80 = vmatpush.msra.mxu0 0.0
  %81 = vmatpush.msra.mxu0 0.0
  %82 = vmatpush.msra.mxu0 0.0
  %83 = vmatpush.msra.mxu0 0.0
  %84 = vmatpush.msra.mxu0 0.0
  %85 = vmatpush.msra.mxu0 0.0
  %86 = vmatpush.msra.mxu0 0.0
  %87 = vmatpush.msra.mxu0 0.0
  %88 = vmatpush.msra.mxu0 0.0
  %89 = vmatpush.msra.mxu0 0.0
  %90 = vmatpush.msra.mxu0 0.0
  %91 = vmatpush.msra.mxu0 %v38
  %92 = vmatpush.msra.mxu0 %v34
  %93 = vmatmul.f32.gmra.mxu0 %v54
  %v94 = vpop.f32.mrf.mxu0
  %v95 = vadd.f32 %v44, %v94
  %96 = vmatmul.f32.gmra.mxu0 %v57
  %v97 = vpop.f32.mrf.mxu0
  %v98 = vadd.f32 %v44, %v97
  %99 = vmatmul.f32.gmra.mxu0 %v60
  %v100 = vpop.f32.mrf.mxu0
  %v101 = vadd.f32 %v44, %v100
  %102 = vmatmul.f32.gmra.mxu0 %v63
  %v103 = vpop.f32.mrf.mxu0
  %v104 = vadd.f32 %v44, %v103
  %105 = vmatmul.f32.gmra.mxu0 %v66
  %v106 = vpop.f32.mrf.mxu0
  %v107 = vadd.f32 %v44, %v106
  %108 = vmatmul.f32.gmra.mxu0 %v69
  %v109 = vpop.f32.mrf.mxu0
  %v110 = vadd.f32 %v44, %v109
  %111 = vmatmul.f32.gmra.mxu0 %v72
  %v112 = vpop.f32.mrf.mxu0
  %v113 = vadd.f32 %v44, %v112
  %114 = vmatmul.f32.gmra.mxu0 %v75
  %v115 = vpop.f32.mrf.mxu0
  %v116 = vadd.f32 %v44, %v115
  %117 = vdwg.mxu0
  %118 = vmatpush.msra.mxu0 0.0
  %119 = vmatpush.msra.mxu0 0.0
  %120 = vmatpush.msra.mxu0 0.0
  %121 = vmatpush.msra.mxu0 0.0
  %122 = vmatpush.msra.mxu0 0.0
  %123 = vmatpush.msra.mxu0 0.0
  %124 = vmatpush.msra.mxu0 0.0
  %125 = vmatpush.msra.mxu0 0.0
  %126 = vmatpush.msra.mxu0 0.0
  %127 = vmatpush.msra.mxu0 0.0
  %128 = vmatpush.msra.mxu0 0.0
  %129 = vmatpush.msra.mxu0 0.0
  %130 = vmatpush.msra.mxu0 0.0
  %131 = vmatpush.msra.mxu0 0.0
  %132 = vmatpush.msra.mxu0 %v39
  %133 = vmatpush.msra.mxu0 %v35
  %134 = vmatmul.f32.gmra.mxu0 %v54
  %v135 = vpop.f32.mrf.mxu0
  %v136 = vadd.f32 %v45, %v135
  %137 = vmatmul.f32.gmra.mxu0 %v57
  %v138 = vpop.f32.mrf.mxu0
  %v139 = vadd.f32 %v45, %v138
  %140 = vmatmul.f32.gmra.mxu0 %v60
  %v141 = vpop.f32.mrf.mxu0
  %v142 = vadd.f32 %v45, %v141
  %143 = vmatmul.f32.gmra.mxu0 %v63
  %v144 = vpop.f32.mrf.mxu0
  %v145 = vadd.f32 %v45, %v144
  %146 = vmatmul.f32.gmra.mxu0 %v66
  %v147 = vpop.f32.mrf.mxu0
  %v148 = vadd.f32 %v45, %v147
  %149 = vmatmul.f32.gmra.mxu0 %v69
  %v150 = vpop.f32.mrf.mxu0
  %v151 = vadd.f32 %v45, %v150
  %152 = vmatmul.f32.gmra.mxu0 %v72
  %v153 = vpop.f32.mrf.mxu0
  %v154 = vadd.f32 %v45, %v153
  %155 = vmatmul.f32.gmra.mxu0 %v75
  %v156 = vpop.f32.mrf.mxu0
  %v157 = vadd.f32 %v45, %v156
  %158 = vdwg.mxu0
  %159 = vmatpush.msra.mxu0 0.0
  %160 = vmatpush.msra.mxu0 0.0
  %161 = vmatpush.msra.mxu0 0.0
  %162 = vmatpush.msra.mxu0 0.0
  %163 = vmatpush.msra.mxu0 0.0
  %164 = vmatpush.msra.mxu0 0.0
  %165 = vmatpush.msra.mxu0 0.0
  %166 = vmatpush.msra.mxu0 0.0
  %167 = vmatpush.msra.mxu0 0.0
  %168 = vmatpush.msra.mxu0 0.0
  %169 = vmatpush.msra.mxu0 0.0
  %170 = vmatpush.msra.mxu0 0.0
  %171 = vmatpush.msra.mxu0 0.0
  %172 = vmatpush.msra.mxu0 0.0
  %173 = vmatpush.msra.mxu0 %v40
  %174 = vmatpush.msra.mxu0 %v36
  %175 = vmatmul.f32.gmra.mxu0 %v54
  %v176 = vpop.f32.mrf.mxu0
  %v177 = vadd.f32 %v46, %v176
  %178 = vmatmul.f32.gmra.mxu0 %v57
  %v179 = vpop.f32.mrf.mxu0
  %v180 = vadd.f32 %v46, %v179
  %181 = vmatmul.f32.gmra.mxu0 %v60
  %v182 = vpop.f32.mrf.mxu0
  %v183 = vadd.f32 %v46, %v182
  %184 = vmatmul.f32.gmra.mxu0 %v63
  %v185 = vpop.f32.mrf.mxu0
  %v186 = vadd.f32 %v46, %v185
  %187 = vmatmul.f32.gmra.mxu0 %v66
  %v188 = vpop.f32.mrf.mxu0
  %v189 = vadd.f32 %v46, %v188
  %190 = vmatmul.f32.gmra.mxu0 %v69
  %v191 = vpop.f32.mrf.mxu0
  %v192 = vadd.f32 %v46, %v191
  %193 = vmatmul.f32.gmra.mxu0 %v72
  %v194 = vpop.f32.mrf.mxu0
  %v195 = vadd.f32 %v46, %v194
  %196 = vmatmul.f32.gmra.mxu0 %v75
  %v197 = vpop.f32.mrf.mxu0
  %v198 = vadd.f32 %v46, %v197
  %199 = vdwg.mxu0
  %200 = vmatpush.msra.mxu0 0.0
  %201 = vmatpush.msra.mxu0 0.0
  %202 = vmatpush.msra.mxu0 0.0
  %203 = vmatpush.msra.mxu0 0.0
  %204 = vmatpush.msra.mxu0 0.0
  %205 = vmatpush.msra.mxu0 0.0
  %206 = vmatpush.msra.mxu0 0.0
  %207 = vmatpush.msra.mxu0 0.0
  %208 = vmatpush.msra.mxu0 0.0
  %209 = vmatpush.msra.mxu0 0.0
  %210 = vmatpush.msra.mxu0 0.0
  %211 = vmatpush.msra.mxu0 0.0
  %212 = vmatpush.msra.mxu0 0.0
  %213 = vmatpush.msra.mxu0 0.0
  %214 = vmatpush.msra.mxu0 %v41
  %215 = vmatpush.msra.mxu0 %v37
  %216 = vmatmul.f32.gmra.mxu0 %v54
  %v217 = vpop.f32.mrf.mxu0
  %v218 = vadd.f32 %v47, %v217
  %219 = vmatmul.f32.gmra.mxu0 %v57
  %v220 = vpop.f32.mrf.mxu0
  %v221 = vadd.f32 %v47, %v220
  %222 = vmatmul.f32.gmra.mxu0 %v60
  %v223 = vpop.f32.mrf.mxu0
  %v224 = vadd.f32 %v47, %v223
  %225 = vmatmul.f32.gmra.mxu0 %v63
  %v226 = vpop.f32.mrf.mxu0
  %v227 = vadd.f32 %v47, %v226
  %228 = vmatmul.f32.gmra.mxu0 %v66
  %v229 = vpop.f32.mrf.mxu0
  %v230 = vadd.f32 %v47, %v229
  %231 = vmatmul.f32.gmra.mxu0 %v69
  %v232 = vpop.f32.mrf.mxu0
  %v233 = vadd.f32 %v47, %v232
  %234 = vmatmul.f32.gmra.mxu0 %v72
  %v235 = vpop.f32.mrf.mxu0
  %v236 = vadd.f32 %v47, %v235
  %237 = vmatmul.f32.gmra.mxu0 %v75
  %v238 = vpop.f32.mrf.mxu0
  %v239 = vadd.f32 %v47, %v238
  %240 = vdwg.mxu0
  %241 = vst [vmem:[#allocation4] sm:$0xff] %v95
  %242 = vst [vmem:[#allocation4 + $0x8] sm:$0xff] %v136
  %243 = vst [vmem:[#allocation4 + $0x10] sm:$0xff] %v177
  %244 = vst [vmem:[#allocation4 + $0x18] sm:$0xff] %v218
  %245 = vst [vmem:[#allocation4 + $0x20] sm:$0xff] %v98
  %246 = vst [vmem:[#allocation4 + $0x28] sm:$0xff] %v139
  %247 = vst [vmem:[#allocation4 + $0x30] sm:$0xff] %v180
  %248 = vst [vmem:[#allocation4 + $0x38] sm:$0xff] %v221
  %249 = vst [vmem:[#allocation4 + $0x40] sm:$0xff] %v101
  %250 = vst [vmem:[#allocation4 + $0x48] sm:$0xff] %v142
  %251 = vst [vmem:[#allocation4 + $0x50] sm:$0xff] %v183
  %252 = vst [vmem:[#allocation4 + $0x58] sm:$0xff] %v224
  %253 = vst [vmem:[#allocation4 + $0x60] sm:$0xff] %v104
  %254 = vst [vmem:[#allocation4 + $0x68] sm:$0xff] %v145
  %255 = vst [vmem:[#allocation4 + $0x70] sm:$0xff] %v186
  %256 = vst [vmem:[#allocation4 + $0x78] sm:$0xff] %v227
  %257 = vst [vmem:[#allocation4 + $0x80] sm:$0xff] %v107
  %258 = vst [vmem:[#allocation4 + $0x88] sm:$0xff] %v148
  %259 = vst [vmem:[#allocation4 + $0x90] sm:$0xff] %v189
  %260 = vst [vmem:[#allocation4 + $0x98] sm:$0xff] %v230
  %261 = vst [vmem:[#allocation4 + $0xa0] sm:$0xff] %v110
  %262 = vst [vmem:[#allocation4 + $0xa8] sm:$0xff] %v151
  %263 = vst [vmem:[#allocation4 + $0xb0] sm:$0xff] %v192
  %264 = vst [vmem:[#allocation4 + $0xb8] sm:$0xff] %v233
  %265 = vst [vmem:[#allocation4 + $0xc0] sm:$0xff] %v113
  %266 = vst [vmem:[#allocation4 + $0xc8] sm:$0xff] %v154
  %267 = vst [vmem:[#allocation4 + $0xd0] sm:$0xff] %v195
  %268 = vst [vmem:[#allocation4 + $0xd8] sm:$0xff] %v236
  %269 = vst [vmem:[#allocation4 + $0xe0] sm:$0xff] %v116
  %270 = vst [vmem:[#allocation4 + $0xe8] sm:$0xff] %v157
  %271 = vst [vmem:[#allocation4 + $0xf0] sm:$0xff] %v198
  %272 = vst [vmem:[#allocation4 + $0xf8] sm:$0xff] %v239
  %v273 = vld [vmem:[%s3] sm:$0xff]
  %v274 = vld [vmem:[%s3 + $0x8] sm:$0xff]
  %v275 = vld [vmem:[%s3 + $0x10] sm:$0xff]
  %v276 = vld [vmem:[%s3 + $0x18] sm:$0xff]
  %v277 = vld [vmem:[%s3 + $0x20] sm:$0xff]
  %v278 = vld [vmem:[%s3 + $0x28] sm:$0xff]
  %v279 = vld [vmem:[%s3 + $0x30] sm:$0xff]
  %v280 = vld [vmem:[%s3 + $0x38] sm:$0xff]
  %v281 = vld [vmem:[%s3 + $0x40] sm:$0xff]
  %v282 = vld [vmem:[%s3 + $0x48] sm:$0xff]
  %v283 = vld [vmem:[%s3 + $0x50] sm:$0xff]
  %v284 = vld [vmem:[%s3 + $0x58] sm:$0xff]
  %v285 = vld [vmem:[%s3 + $0x60] sm:$0xff]
  %v286 = vld [vmem:[%s3 + $0x68] sm:$0xff]
  %v287 = vld [vmem:[%s3 + $0x70] sm:$0xff]
  %v288 = vld [vmem:[%s3 + $0x78] sm:$0xff]
  %v289 = vld [vmem:[%s3 + $0x80] sm:$0xff]
  %v290 = vld [vmem:[%s3 + $0x88] sm:$0xff]
  %v291 = vld [vmem:[%s3 + $0x90] sm:$0xff]
  %v292 = vld [vmem:[%s3 + $0x98] sm:$0xff]
  %v293 = vld [vmem:[%s3 + $0xa0] sm:$0xff]
  %v294 = vld [vmem:[%s3 + $0xa8] sm:$0xff]
  %v295 = vld [vmem:[%s3 + $0xb0] sm:$0xff]
  %v296 = vld [vmem:[%s3 + $0xb8] sm:$0xff]
  %v297 = vld [vmem:[%s3 + $0xc0] sm:$0xff]
  %v298 = vld [vmem:[%s3 + $0xc8] sm:$0xff]
  %v299 = vld [vmem:[%s3 + $0xd0] sm:$0xff]
  %v300 = vld [vmem:[%s3 + $0xd8] sm:$0xff]
  %v301 = vld [vmem:[%s3 + $0xe0] sm:$0xff]
  %v302 = vld [vmem:[%s3 + $0xe8] sm:$0xff]
  %v303 = vld [vmem:[%s3 + $0xf0] sm:$0xff]
  %v304 = vld [vmem:[%s3 + $0xf8] sm:$0xff]
  %v305 = vld [vmem:[%s3 + $0x100] sm:$0xff]
  %v306 = vld [vmem:[%s3 + $0x108] sm:$0xff]
  %v307 = vld [vmem:[%s3 + $0x110] sm:$0xff]
  %v308 = vld [vmem:[%s3 + $0x118] sm:$0xff]
  %v309 = vld [vmem:[%s3 + $0x120] sm:$0xff]
  %v310 = vld [vmem:[%s3 + $0x128] sm:$0xff]
  %v311 = vld [vmem:[%s3 + $0x130] sm:$0xff]
  %v312 = vld [vmem:[%s3 + $0x138] sm:$0xff]
  %v313 = vld [vmem:[%s3 + $0x140] sm:$0xff]
  %v314 = vld [vmem:[%s3 + $0x148] sm:$0xff]
  %v315 = vld [vmem:[%s3 + $0x150] sm:$0xff]
  %v316 = vld [vmem:[%s3 + $0x158] sm:$0xff]
  %v317 = vld [vmem:[%s3 + $0x160] sm:$0xff]
  %v318 = vld [vmem:[%s3 + $0x168] sm:$0xff]
  %v319 = vld [vmem:[%s3 + $0x170] sm:$0xff]
  %v320 = vld [vmem:[%s3 + $0x178] sm:$0xff]
  %v321 = vld [vmem:[%s3 + $0x180] sm:$0xff]
  %v322 = vld [vmem:[%s3 + $0x188] sm:$0xff]
  %v323 = vld [vmem:[%s3 + $0x190] sm:$0xff]
  %v324 = vld [vmem:[%s3 + $0x198] sm:$0xff]
  %v325 = vld [vmem:[%s3 + $0x1a0] sm:$0xff]
  %v326 = vld [vmem:[%s3 + $0x1a8] sm:$0xff]
  %v327 = vld [vmem:[%s3 + $0x1b0] sm:$0xff]
  %v328 = vld [vmem:[%s3 + $0x1b8] sm:$0xff]
  %v329 = vld [vmem:[%s3 + $0x1c0] sm:$0xff]
  %v330 = vld [vmem:[%s3 + $0x1c8] sm:$0xff]
  %v331 = vld [vmem:[%s3 + $0x1d0] sm:$0xff]
  %v332 = vld [vmem:[%s3 + $0x1d8] sm:$0xff]
  %v333 = vld [vmem:[%s3 + $0x1e0] sm:$0xff]
  %v334 = vld [vmem:[%s3 + $0x1e8] sm:$0xff]
  %v335 = vld [vmem:[%s3 + $0x1f0] sm:$0xff]
  %v336 = vld [vmem:[%s3 + $0x1f8] sm:$0xff]
  %v337 = vld [vmem:[#allocation2] sm:$0xff]
  %v338 = vld [vmem:[#allocation3] sm:$0xff]
  %v339 = vld [vmem:[#allocation4] sm:$0xff]
  %v340 = vld [vmem:[#allocation4 + $0x8] sm:$0xff]
  %v341 = vld [vmem:[#allocation4 + $0x10] sm:$0xff]
  %v342 = vld [vmem:[#allocation4 + $0x18] sm:$0xff]
  %343 = vmatpush.msra.mxu0 %v333
  %344 = vmatpush.msra.mxu0 %v329
  %345 = vmatpush.msra.mxu0 %v325
  %346 = vmatpush.msra.mxu0 %v321
  %347 = vmatpush.msra.mxu0 %v317
  %348 = vmatpush.msra.mxu0 %v313
  %349 = vmatpush.msra.mxu0 %v309
  %350 = vmatpush.msra.mxu0 %v305
  %351 = vmatpush.msra.mxu0 %v301
  %352 = vmatpush.msra.mxu0 %v297
  %353 = vmatpush.msra.mxu0 %v293
  %354 = vmatpush.msra.mxu0 %v289
  %355 = vmatpush.msra.mxu0 %v285
  %356 = vmatpush.msra.mxu0 %v281
  %357 = vmatpush.msra.mxu0 %v277
  %358 = vmatpush.msra.mxu0 %v273
  %359 = vmatmul.f32.gmra.mxu0 %v337
  %v360 = vpop.f32.mrf.mxu0
  %v361 = vadd.f32 0.0, %v360
  %362 = vdwg.mxu0
  %363 = vmatpush.msra.mxu0 %v334
  %364 = vmatpush.msra.mxu0 %v330
  %365 = vmatpush.msra.mxu0 %v326
  %366 = vmatpush.msra.mxu0 %v322
  %367 = vmatpush.msra.mxu0 %v318
  %368 = vmatpush.msra.mxu0 %v314
  %369 = vmatpush.msra.mxu0 %v310
  %370 = vmatpush.msra.mxu0 %v306
  %371 = vmatpush.msra.mxu0 %v302
  %372 = vmatpush.msra.mxu0 %v298
  %373 = vmatpush.msra.mxu0 %v294
  %374 = vmatpush.msra.mxu0 %v290
  %375 = vmatpush.msra.mxu0 %v286
  %376 = vmatpush.msra.mxu0 %v282
  %377 = vmatpush.msra.mxu0 %v278
  %378 = vmatpush.msra.mxu0 %v274
  %379 = vmatmul.f32.gmra.mxu0 %v337
  %v380 = vpop.f32.mrf.mxu0
  %v381 = vadd.f32 0.0, %v380
  %382 = vdwg.mxu0
  %383 = vmatpush.msra.mxu0 %v335
  %384 = vmatpush.msra.mxu0 %v331
  %385 = vmatpush.msra.mxu0 %v327
  %386 = vmatpush.msra.mxu0 %v323
  %387 = vmatpush.msra.mxu0 %v319
  %388 = vmatpush.msra.mxu0 %v315
  %389 = vmatpush.msra.mxu0 %v311
  %390 = vmatpush.msra.mxu0 %v307
  %391 = vmatpush.msra.mxu0 %v303
  %392 = vmatpush.msra.mxu0 %v299
  %393 = vmatpush.msra.mxu0 %v295
  %394 = vmatpush.msra.mxu0 %v291
  %395 = vmatpush.msra.mxu0 %v287
  %396 = vmatpush.msra.mxu0 %v283
  %397 = vmatpush.msra.mxu0 %v279
  %398 = vmatpush.msra.mxu0 %v275
  %399 = vmatmul.f32.gmra.mxu0 %v337
  %v400 = vpop.f32.mrf.mxu0
  %v401 = vadd.f32 0.0, %v400
  %402 = vdwg.mxu0
  %403 = vmatpush.msra.mxu0 %v336
  %404 = vmatpush.msra.mxu0 %v332
  %405 = vmatpush.msra.mxu0 %v328
  %406 = vmatpush.msra.mxu0 %v324
  %407 = vmatpush.msra.mxu0 %v320
  %408 = vmatpush.msra.mxu0 %v316
  %409 = vmatpush.msra.mxu0 %v312
  %410 = vmatpush.msra.mxu0 %v308
  %411 = vmatpush.msra.mxu0 %v304
  %412 = vmatpush.msra.mxu0 %v300
  %413 = vmatpush.msra.mxu0 %v296
  %414 = vmatpush.msra.mxu0 %v292
  %415 = vmatpush.msra.mxu0 %v288
  %416 = vmatpush.msra.mxu0 %v284
  %417 = vmatpush.msra.mxu0 %v280
  %418 = vmatpush.msra.mxu0 %v276
  %419 = vmatmul.f32.gmra.mxu0 %v337
  %v420 = vpop.f32.mrf.mxu0
  %v421 = vadd.f32 0.0, %v420
  %422 = vdwg.mxu0
  %v423 = vadd.f32 %v339, %v361
  %v424 = vadd.f32 %v340, %v381
  %v425 = vadd.f32 %v341, %v401
  %v426 = vadd.f32 %v342, %v421
  %v427 = vxor.u32 %v423, 2147483648
  %v428 = vmul.f32 %v427, 1.442695
  %v429 = vpow.pop %v428
  %v430 = vadd.f32 %v429, 1.0
  %v431 = vrcp.pop %v430
  %v432 = vmul.f32 %v430, %v431
  %v433 = vsub.f32 1.0, %v432
  %v434 = vmul.f32 %v431, %v433
  %v435 = vadd.f32 %v431, %v434
  %vm436 = vweird.f32 %v430
  %vm437 = vweird.f32 %v431
  %vm438 = vmor %vm436, %vm437
  %v439 = vsel %vm438, %v431, %v435
  %v440 = vand.u32 2147483647, %v430
  %vm441 = vcmp.eq.f32.partialorder %v440, 8.507059e+37
  %v442 = vand.u32 %v430, 2147483648
  %v443 = vor.u32 1.1754944e-38, %v442
  %v444 = vsel %vm441, %v443, %v439
  %v445 = vmul.f32 1.0, %v444
  %v446 = vxor.u32 %v424, 2147483648
  %v447 = vmul.f32 %v446, 1.442695
  %v448 = vpow.pop %v447
  %v449 = vadd.f32 %v448, 1.0
  %v450 = vrcp.pop %v449
  %v451 = vmul.f32 %v449, %v450
  %v452 = vsub.f32 1.0, %v451
  %v453 = vmul.f32 %v450, %v452
  %v454 = vadd.f32 %v450, %v453
  %vm455 = vweird.f32 %v449
  %vm456 = vweird.f32 %v450
  %vm457 = vmor %vm455, %vm456
  %v458 = vsel %vm457, %v450, %v454
  %v459 = vand.u32 2147483647, %v449
  %vm460 = vcmp.eq.f32.partialorder %v459, 8.507059e+37
  %v461 = vand.u32 %v449, 2147483648
  %v462 = vor.u32 1.1754944e-38, %v461
  %v463 = vsel %vm460, %v462, %v458
  %v464 = vmul.f32 1.0, %v463
  %v465 = vtanh.pop %v425
  %v466 = vxor.u32 %v426, 2147483648
  %v467 = vmul.f32 %v466, 1.442695
  %v468 = vpow.pop %v467
  %v469 = vadd.f32 %v468, 1.0
  %v470 = vrcp.pop %v469
  %v471 = vmul.f32 %v469, %v470
  %v472 = vsub.f32 1.0, %v471
  %v473 = vmul.f32 %v470, %v472
  %v474 = vadd.f32 %v470, %v473
  %vm475 = vweird.f32 %v469
  %vm476 = vweird.f32 %v470
  %vm477 = vmor %vm475, %vm476
  %v478 = vsel %vm477, %v470, %v474
  %v479 = vand.u32 2147483647, %v469
  %vm480 = vcmp.eq.f32.partialorder %v479, 8.507059e+37
  %v481 = vand.u32 %v469, 2147483648
  %v482 = vor.u32 1.1754944e-38, %v481
  %v483 = vsel %vm480, %v482, %v478
  %v484 = vmul.f32 1.0, %v483
  %v485 = vmul.f32 %v464, %v338
  %v486 = vmul.f32 %v445, %v465
  %v487 = vadd.f32 %v485, %v486
  %v488 = vtanh.pop %v487
  %v489 = vmul.f32 %v484, %v488
  %490 = vst [vmem:[#allocation5] sm:$0xff] %v489
  %s491 = scalar_lea.vmem [#allocation4], 32
  %v492 = vld [vmem:[%s491] sm:$0xff]
  %v493 = vld [vmem:[%s491 + $0x8] sm:$0xff]
  %v494 = vld [vmem:[%s491 + $0x10] sm:$0xff]
  %v495 = vld [vmem:[%s491 + $0x18] sm:$0xff]
  %496 = vmatpush.msra.mxu0 %v333
  %497 = vmatpush.msra.mxu0 %v329
  %498 = vmatpush.msra.mxu0 %v325
  %499 = vmatpush.msra.mxu0 %v321
  %500 = vmatpush.msra.mxu0 %v317
  %501 = vmatpush.msra.mxu0 %v313
  %502 = vmatpush.msra.mxu0 %v309
  %503 = vmatpush.msra.mxu0 %v305
  %504 = vmatpush.msra.mxu0 %v301
  %505 = vmatpush.msra.mxu0 %v297
  %506 = vmatpush.msra.mxu0 %v293
  %507 = vmatpush.msra.mxu0 %v289
  %508 = vmatpush.msra.mxu0 %v285
  %509 = vmatpush.msra.mxu0 %v281
  %510 = vmatpush.msra.mxu0 %v277
  %511 = vmatpush.msra.mxu0 %v273
  %512 = vmatmul.f32.gmra.mxu0 %v489
  %v513 = vpop.f32.mrf.mxu0
  %v514 = vadd.f32 0.0, %v513
  %515 = vdwg.mxu0
  %516 = vmatpush.msra.mxu0 %v334
  %517 = vmatpush.msra.mxu0 %v330
  %518 = vmatpush.msra.mxu0 %v326
  %519 = vmatpush.msra.mxu0 %v322
  %520 = vmatpush.msra.mxu0 %v318
  %521 = vmatpush.msra.mxu0 %v314
  %522 = vmatpush.msra.mxu0 %v310
  %523 = vmatpush.msra.mxu0 %v306
  %524 = vmatpush.msra.mxu0 %v302
  %525 = vmatpush.msra.mxu0 %v298
  %526 = vmatpush.msra.mxu0 %v294
  %527 = vmatpush.msra.mxu0 %v290
  %528 = vmatpush.msra.mxu0 %v286
  %529 = vmatpush.msra.mxu0 %v282
  %530 = vmatpush.msra.mxu0 %v278
  %531 = vmatpush.msra.mxu0 %v274
  %532 = vmatmul.f32.gmra.mxu0 %v489
  %v533 = vpop.f32.mrf.mxu0
  %v534 = vadd.f32 0.0, %v533
  %535 = vdwg.mxu0
  %536 = vmatpush.msra.mxu0 %v335
  %537 = vmatpush.msra.mxu0 %v331
  %538 = vmatpush.msra.mxu0 %v327
  %539 = vmatpush.msra.mxu0 %v323
  %540 = vmatpush.msra.mxu0 %v319
  %541 = vmatpush.msra.mxu0 %v315
  %542 = vmatpush.msra.mxu0 %v311
  %543 = vmatpush.msra.mxu0 %v307
  %544 = vmatpush.msra.mxu0 %v303
  %545 = vmatpush.msra.mxu0 %v299
  %546 = vmatpush.msra.mxu0 %v295
  %547 = vmatpush.msra.mxu0 %v291
  %548 = vmatpush.msra.mxu0 %v287
  %549 = vmatpush.msra.mxu0 %v283
  %550 = vmatpush.msra.mxu0 %v279
  %551 = vmatpush.msra.mxu0 %v275
  %552 = vmatmul.f32.gmra.mxu0 %v489
  %v553 = vpop.f32.mrf.mxu0
  %v554 = vadd.f32 0.0, %v553
  %555 = vdwg.mxu0
  %556 = vmatpush.msra.mxu0 %v336
  %557 = vmatpush.msra.mxu0 %v332
  %558 = vmatpush.msra.mxu0 %v328
  %559 = vmatpush.msra.mxu0 %v324
  %560 = vmatpush.msra.mxu0 %v320
  %561 = vmatpush.msra.mxu0 %v316
  %562 = vmatpush.msra.mxu0 %v312
  %563 = vmatpush.msra.mxu0 %v308
  %564 = vmatpush.msra.mxu0 %v304
  %565 = vmatpush.msra.mxu0 %v300
  %566 = vmatpush.msra.mxu0 %v296
  %567 = vmatpush.msra.mxu0 %v292
  %568 = vmatpush.msra.mxu0 %v288
  %569 = vmatpush.msra.mxu0 %v284
  %570 = vmatpush.msra.mxu0 %v280
  %571 = vmatpush.msra.mxu0 %v276
  %572 = vmatmul.f32.gmra.mxu0 %v489
  %v573 = vpop.f32.mrf.mxu0
  %v574 = vadd.f32 0.0, %v573
  %575 = vdwg.mxu0
  %v576 = vadd.f32 %v492, %v514
  %v577 = vadd.f32 %v493, %v534
  %v578 = vadd.f32 %v494, %v554
  %v579 = vadd.f32 %v495, %v574
  %v580 = vxor.u32 %v576, 2147483648
  %v581 = vmul.f32 %v580, 1.442695
  %v582 = vpow.pop %v581
  %v583 = vadd.f32 %v582, 1.0
  %v584 = vrcp.pop %v583
  %v585 = vmul.f32 %v583, %v584
  %v586 = vsub.f32 1.0, %v585
  %v587 = vmul.f32 %v584, %v586
  %v588 = vadd.f32 %v584, %v587
  %vm589 = vweird.f32 %v583
  %vm590 = vweird.f32 %v584
  %vm591 = vmor %vm589, %vm590
  %v592 = vsel %vm591, %v584, %v588
  %v593 = vand.u32 2147483647, %v583
  %vm594 = vcmp.eq.f32.partialorder %v593, 8.507059e+37
  %v595 = vand.u32 %v583, 2147483648
  %v596 = vor.u32 1.1754944e-38, %v595
  %v597 = vsel %vm594, %v596, %v592
  %v598 = vmul.f32 1.0, %v597
  %v599 = vxor.u32 %v577, 2147483648
  %v600 = vmul.f32 %v599, 1.442695
  %v601 = vpow.pop %v600
  %v602 = vadd.f32 %v601, 1.0
  %v603 = vrcp.pop %v602
  %v604 = vmul.f32 %v602, %v603
  %v605 = vsub.f32 1.0, %v604
  %v606 = vmul.f32 %v603, %v605
  %v607 = vadd.f32 %v603, %v606
  %vm608 = vweird.f32 %v602
  %vm609 = vweird.f32 %v603
  %vm610 = vmor %vm608, %vm609
  %v611 = vsel %vm610, %v603, %v607
  %v612 = vand.u32 2147483647, %v602
  %vm613 = vcmp.eq.f32.partialorder %v612, 8.507059e+37
  %v614 = vand.u32 %v602, 2147483648
  %v615 = vor.u32 1.1754944e-38, %v614
  %v616 = vsel %vm613, %v615, %v611
  %v617 = vmul.f32 1.0, %v616
  %v618 = vtanh.pop %v578
  %v619 = vxor.u32 %v579, 2147483648
  %v620 = vmul.f32 %v619, 1.442695
  %v621 = vpow.pop %v620
  %v622 = vadd.f32 %v621, 1.0
  %v623 = vrcp.pop %v622
  %v624 = vmul.f32 %v622, %v623
  %v625 = vsub.f32 1.0, %v624
  %v626 = vmul.f32 %v623, %v625
  %v627 = vadd.f32 %v623, %v626
  %vm628 = vweird.f32 %v622
  %vm629 = vweird.f32 %v623
  %vm630 = vmor %vm628, %vm629
  %v631 = vsel %vm630, %v623, %v627
  %v632 = vand.u32 2147483647, %v622
  %vm633 = vcmp.eq.f32.partialorder %v632, 8.507059e+37
  %v634 = vand.u32 %v622, 2147483648
  %v635 = vor.u32 1.1754944e-38, %v634
  %v636 = vsel %vm633, %v635, %v631
  %v637 = vmul.f32 1.0, %v636
  %v638 = vmul.f32 %v617, %v487
  %v639 = vmul.f32 %v598, %v618
  %v640 = vadd.f32 %v638, %v639
  %v641 = vtanh.pop %v640
  %v642 = vmul.f32 %v637, %v641
  %s643 = scalar_lea.vmem [#allocation5], 8
  %644 = vst [vmem:[%s643] sm:$0xff] %v642
  %s645 = scalar_lea.vmem [#allocation4], 64
  %v646 = vld [vmem:[%s645] sm:$0xff]
  %v647 = vld [vmem:[%s645 + $0x8] sm:$0xff]
  %v648 = vld [vmem:[%s645 + $0x10] sm:$0xff]
  %v649 = vld [vmem:[%s645 + $0x18] sm:$0xff]
  %650 = vmatpush.msra.mxu0 %v333
  %651 = vmatpush.msra.mxu0 %v329
  %652 = vmatpush.msra.mxu0 %v325
  %653 = vmatpush.msra.mxu0 %v321
  %654 = vmatpush.msra.mxu0 %v317
  %655 = vmatpush.msra.mxu0 %v313
  %656 = vmatpush.msra.mxu0 %v309
  %657 = vmatpush.msra.mxu0 %v305
  %658 = vmatpush.msra.mxu0 %v301
  %659 = vmatpush.msra.mxu0 %v297
  %660 = vmatpush.msra.mxu0 %v293
  %661 = vmatpush.msra.mxu0 %v289
  %662 = vmatpush.msra.mxu0 %v285
  %663 = vmatpush.msra.mxu0 %v281
  %664 = vmatpush.msra.mxu0 %v277
  %665 = vmatpush.msra.mxu0 %v273
  %666 = vmatmul.f32.gmra.mxu0 %v642
  %v667 = vpop.f32.mrf.mxu0
  %v668 = vadd.f32 0.0, %v667
  %669 = vdwg.mxu0
  %670 = vmatpush.msra.mxu0 %v334
  %671 = vmatpush.msra.mxu0 %v330
  %672 = vmatpush.msra.mxu0 %v326
  %673 = vmatpush.msra.mxu0 %v322
  %674 = vmatpush.msra.mxu0 %v318
  %675 = vmatpush.msra.mxu0 %v314
  %676 = vmatpush.msra.mxu0 %v310
  %677 = vmatpush.msra.mxu0 %v306
  %678 = vmatpush.msra.mxu0 %v302
  %679 = vmatpush.msra.mxu0 %v298
  %680 = vmatpush.msra.mxu0 %v294
  %681 = vmatpush.msra.mxu0 %v290
  %682 = vmatpush.msra.mxu0 %v286
  %683 = vmatpush.msra.mxu0 %v282
  %684 = vmatpush.msra.mxu0 %v278
  %685 = vmatpush.msra.mxu0 %v274
  %686 = vmatmul.f32.gmra.mxu0 %v642
  %v687 = vpop.f32.mrf.mxu0
  %v688 = vadd.f32 0.0, %v687
  %689 = vdwg.mxu0
  %690 = vmatpush.msra.mxu0 %v335
  %691 = vmatpush.msra.mxu0 %v331
  %692 = vmatpush.msra.mxu0 %v327
  %693 = vmatpush.msra.mxu0 %v323
  %694 = vmatpush.msra.mxu0 %v319
  %695 = vmatpush.msra.mxu0 %v315
  %696 = vmatpush.msra.mxu0 %v311
  %697 = vmatpush.msra.mxu0 %v307
  %698 = vmatpush.msra.mxu0 %v303
  %699 = vmatpush.msra.mxu0 %v299
  %700 = vmatpush.msra.mxu0 %v295
  %701 = vmatpush.msra.mxu0 %v291
  %702 = vmatpush.msra.mxu0 %v287
  %703 = vmatpush.msra.mxu0 %v283
  %704 = vmatpush.msra.mxu0 %v279
  %705 = vmatpush.msra.mxu0 %v275
  %706 = vmatmul.f32.gmra.mxu0 %v642
  %v707 = vpop.f32.mrf.mxu0
  %v708 = vadd.f32 0.0, %v707
  %709 = vdwg.mxu0
  %710 = vmatpush.msra.mxu0 %v336
  %711 = vmatpush.msra.mxu0 %v332
  %712 = vmatpush.msra.mxu0 %v328
  %713 = vmatpush.msra.mxu0 %v324
  %714 = vmatpush.msra.mxu0 %v320
  %715 = vmatpush.msra.mxu0 %v316
  %716 = vmatpush.msra.mxu0 %v312
  %717 = vmatpush.msra.mxu0 %v308
  %718 = vmatpush.msra.mxu0 %v304
  %719 = vmatpush.msra.mxu0 %v300
  %720 = vmatpush.msra.mxu0 %v296
  %721 = vmatpush.msra.mxu0 %v292
  %722 = vmatpush.msra.mxu0 %v288
  %723 = vmatpush.msra.mxu0 %v284
  %724 = vmatpush.msra.mxu0 %v280
  %725 = vmatpush.msra.mxu0 %v276
  %726 = vmatmul.f32.gmra.mxu0 %v642
  %v727 = vpop.f32.mrf.mxu0
  %v728 = vadd.f32 0.0, %v727
  %729 = vdwg.mxu0
  %v730 = vadd.f32 %v646, %v668
  %v731 = vadd.f32 %v647, %v688
  %v732 = vadd.f32 %v648, %v708
  %v733 = vadd.f32 %v649, %v728
  %v734 = vxor.u32 %v730, 2147483648
  %v735 = vmul.f32 %v734, 1.442695
  %v736 = vpow.pop %v735
  %v737 = vadd.f32 %v736, 1.0
  %v738 = vrcp.pop %v737
  %v739 = vmul.f32 %v737, %v738
  %v740 = vsub.f32 1.0, %v739
  %v741 = vmul.f32 %v738, %v740
  %v742 = vadd.f32 %v738, %v741
  %vm743 = vweird.f32 %v737
  %vm744 = vweird.f32 %v738
  %vm745 = vmor %vm743, %vm744
  %v746 = vsel %vm745, %v738, %v742
  %v747 = vand.u32 2147483647, %v737
  %vm748 = vcmp.eq.f32.partialorder %v747, 8.507059e+37
  %v749 = vand.u32 %v737, 2147483648
  %v750 = vor.u32 1.1754944e-38, %v749
  %v751 = vsel %vm748, %v750, %v746
  %v752 = vmul.f32 1.0, %v751
  %v753 = vxor.u32 %v731, 2147483648
  %v754 = vmul.f32 %v753, 1.442695
  %v755 = vpow.pop %v754
  %v756 = vadd.f32 %v755, 1.0
  %v757 = vrcp.pop %v756
  %v758 = vmul.f32 %v756, %v757
  %v759 = vsub.f32 1.0, %v758
  %v760 = vmul.f32 %v757, %v759
  %v761 = vadd.f32 %v757, %v760
  %vm762 = vweird.f32 %v756
  %vm763 = vweird.f32 %v757
  %vm764 = vmor %vm762, %vm763
  %v765 = vsel %vm764, %v757, %v761
  %v766 = vand.u32 2147483647, %v756
  %vm767 = vcmp.eq.f32.partialorder %v766, 8.507059e+37
  %v768 = vand.u32 %v756, 2147483648
  %v769 = vor.u32 1.1754944e-38, %v768
  %v770 = vsel %vm767, %v769, %v765
  %v771 = vmul.f32 1.0, %v770
  %v772 = vtanh.pop %v732
  %v773 = vxor.u32 %v733, 2147483648
  %v774 = vmul.f32 %v773, 1.442695
  %v775 = vpow.pop %v774
  %v776 = vadd.f32 %v775, 1.0
  %v777 = vrcp.pop %v776
  %v778 = vmul.f32 %v776, %v777
  %v779 = vsub.f32 1.0, %v778
  %v780 = vmul.f32 %v777, %v779
  %v781 = vadd.f32 %v777, %v780
  %vm782 = vweird.f32 %v776
  %vm783 = vweird.f32 %v777
  %vm784 = vmor %vm782, %vm783
  %v785 = vsel %vm784, %v777, %v781
  %v786 = vand.u32 2147483647, %v776
  %vm787 = vcmp.eq.f32.partialorder %v786, 8.507059e+37
  %v788 = vand.u32 %v776, 2147483648
  %v789 = vor.u32 1.1754944e-38, %v788
  %v790 = vsel %vm787, %v789, %v785
  %v791 = vmul.f32 1.0, %v790
  %v792 = vmul.f32 %v771, %v640
  %v793 = vmul.f32 %v752, %v772
  %v794 = vadd.f32 %v792, %v793
  %v795 = vtanh.pop %v794
  %v796 = vmul.f32 %v791, %v795
  %s797 = scalar_lea.vmem [#allocation5], 16
  %798 = vst [vmem:[%s797] sm:$0xff] %v796
  %s799 = scalar_lea.vmem [#allocation4], 96
  %v800 = vld [vmem:[%s799] sm:$0xff]
  %v801 = vld [vmem:[%s799 + $0x8] sm:$0xff]
  %v802 = vld [vmem:[%s799 + $0x10] sm:$0xff]
  %v803 = vld [vmem:[%s799 + $0x18] sm:$0xff]
  %804 = vmatpush.msra.mxu0 %v333
  %805 = vmatpush.msra.mxu0 %v329
  %806 = vmatpush.msra.mxu0 %v325
  %807 = vmatpush.msra.mxu0 %v321
  %808 = vmatpush.msra.mxu0 %v317
  %809 = vmatpush.msra.mxu0 %v313
  %810 = vmatpush.msra.mxu0 %v309
  %811 = vmatpush.msra.mxu0 %v305
  %812 = vmatpush.msra.mxu0 %v301
  %813 = vmatpush.msra.mxu0 %v297
  %814 = vmatpush.msra.mxu0 %v293
  %815 = vmatpush.msra.mxu0 %v289
  %816 = vmatpush.msra.mxu0 %v285
  %817 = vmatpush.msra.mxu0 %v281
  %818 = vmatpush.msra.mxu0 %v277
  %819 = vmatpush.msra.mxu0 %v273
  %820 = vmatmul.f32.gmra.mxu0 %v796
  %v821 = vpop.f32.mrf.mxu0
  %v822 = vadd.f32 0.0, %v821
  %823 = vdwg.mxu0
  %824 = vmatpush.msra.mxu0 %v334
  %825 = vmatpush.msra.mxu0 %v330
  %826 = vmatpush.msra.mxu0 %v326
  %827 = vmatpush.msra.mxu0 %v322
  %828 = vmatpush.msra.mxu0 %v318
  %829 = vmatpush.msra.mxu0 %v314
  %830 = vmatpush.msra.mxu0 %v310
  %831 = vmatpush.msra.mxu0 %v306
  %832 = vmatpush.msra.mxu0 %v302
  %833 = vmatpush.msra.mxu0 %v298
  %834 = vmatpush.msra.mxu0 %v294
  %835 = vmatpush.msra.mxu0 %v290
  %836 = vmatpush.msra.mxu0 %v286
  %837 = vmatpush.msra.mxu0 %v282
  %838 = vmatpush.msra.mxu0 %v278
  %839 = vmatpush.msra.mxu0 %v274
  %840 = vmatmul.f32.gmra.mxu0 %v796
  %v841 = vpop.f32.mrf.mxu0
  %v842 = vadd.f32 0.0, %v841
  %843 = vdwg.mxu0
  %844 = vmatpush.msra.mxu0 %v335
  %845 = vmatpush.msra.mxu0 %v331
  %846 = vmatpush.msra.mxu0 %v327
  %847 = vmatpush.msra.mxu0 %v323
  %848 = vmatpush.msra.mxu0 %v319
  %849 = vmatpush.msra.mxu0 %v315
  %850 = vmatpush.msra.mxu0 %v311
  %851 = vmatpush.msra.mxu0 %v307
  %852 = vmatpush.msra.mxu0 %v303
  %853 = vmatpush.msra.mxu0 %v299
  %854 = vmatpush.msra.mxu0 %v295
  %855 = vmatpush.msra.mxu0 %v291
  %856 = vmatpush.msra.mxu0 %v287
  %857 = vmatpush.msra.mxu0 %v283
  %858 = vmatpush.msra.mxu0 %v279
  %859 = vmatpush.msra.mxu0 %v275
  %860 = vmatmul.f32.gmra.mxu0 %v796
  %v861 = vpop.f32.mrf.mxu0
  %v862 = vadd.f32 0.0, %v861
  %863 = vdwg.mxu0
  %864 = vmatpush.msra.mxu0 %v336
  %865 = vmatpush.msra.mxu0 %v332
  %866 = vmatpush.msra.mxu0 %v328
  %867 = vmatpush.msra.mxu0 %v324
  %868 = vmatpush.msra.mxu0 %v320
  %869 = vmatpush.msra.mxu0 %v316
  %870 = vmatpush.msra.mxu0 %v312
  %871 = vmatpush.msra.mxu0 %v308
  %872 = vmatpush.msra.mxu0 %v304
  %873 = vmatpush.msra.mxu0 %v300
  %874 = vmatpush.msra.mxu0 %v296
  %875 = vmatpush.msra.mxu0 %v292
  %876 = vmatpush.msra.mxu0 %v288
  %877 = vmatpush.msra.mxu0 %v284
  %878 = vmatpush.msra.mxu0 %v280
  %879 = vmatpush.msra.mxu0 %v276
  %880 = vmatmul.f32.gmra.mxu0 %v796
  %v881 = vpop.f32.mrf.mxu0
  %v882 = vadd.f32 0.0, %v881
  %883 = vdwg.mxu0
  %v884 = vadd.f32 %v800, %v822
  %v885 = vadd.f32 %v801, %v842
  %v886 = vadd.f32 %v802, %v862
  %v887 = vadd.f32 %v803, %v882
  %v888 = vxor.u32 %v884, 2147483648
  %v889 = vmul.f32 %v888, 1.442695
  %v890 = vpow.pop %v889
  %v891 = vadd.f32 %v890, 1.0
  %v892 = vrcp.pop %v891
  %v893 = vmul.f32 %v891, %v892
  %v894 = vsub.f32 1.0, %v893
  %v895 = vmul.f32 %v892, %v894
  %v896 = vadd.f32 %v892, %v895
  %vm897 = vweird.f32 %v891
  %vm898 = vweird.f32 %v892
  %vm899 = vmor %vm897, %vm898
  %v900 = vsel %vm899, %v892, %v896
  %v901 = vand.u32 2147483647, %v891
  %vm902 = vcmp.eq.f32.partialorder %v901, 8.507059e+37
  %v903 = vand.u32 %v891, 2147483648
  %v904 = vor.u32 1.1754944e-38, %v903
  %v905 = vsel %vm902, %v904, %v900
  %v906 = vmul.f32 1.0, %v905
  %v907 = vxor.u32 %v885, 2147483648
  %v908 = vmul.f32 %v907, 1.442695
  %v909 = vpow.pop %v908
  %v910 = vadd.f32 %v909, 1.0
  %v911 = vrcp.pop %v910
  %v912 = vmul.f32 %v910, %v911
  %v913 = vsub.f32 1.0, %v912
  %v914 = vmul.f32 %v911, %v913
  %v915 = vadd.f32 %v911, %v914
  %vm916 = vweird.f32 %v910
  %vm917 = vweird.f32 %v911
  %vm918 = vmor %vm916, %vm917
  %v919 = vsel %vm918, %v911, %v915
  %v920 = vand.u32 2147483647, %v910
  %vm921 = vcmp.eq.f32.partialorder %v920, 8.507059e+37
  %v922 = vand.u32 %v910, 2147483648
  %v923 = vor.u32 1.1754944e-38, %v922
  %v924 = vsel %vm921, %v923, %v919
  %v925 = vmul.f32 1.0, %v924
  %v926 = vtanh.pop %v886
  %v927 = vxor.u32 %v887, 2147483648
  %v928 = vmul.f32 %v927, 1.442695
  %v929 = vpow.pop %v928
  %v930 = vadd.f32 %v929, 1.0
  %v931 = vrcp.pop %v930
  %v932 = vmul.f32 %v930, %v931
  %v933 = vsub.f32 1.0, %v932
  %v934 = vmul.f32 %v931, %v933
  %v935 = vadd.f32 %v931, %v934
  %vm936 = vweird.f32 %v930
  %vm937 = vweird.f32 %v931
  %vm938 = vmor %vm936, %vm937
  %v939 = vsel %vm938, %v931, %v935
  %v940 = vand.u32 2147483647, %v930
  %vm941 = vcmp.eq.f32.partialorder %v940, 8.507059e+37
  %v942 = vand.u32 %v930, 2147483648
  %v943 = vor.u32 1.1754944e-38, %v942
  %v944 = vsel %vm941, %v943, %v939
  %v945 = vmul.f32 1.0, %v944
  %v946 = vmul.f32 %v925, %v794
  %v947 = vmul.f32 %v906, %v926
  %v948 = vadd.f32 %v946, %v947
  %v949 = vtanh.pop %v948
  %v950 = vmul.f32 %v945, %v949
  %s951 = scalar_lea.vmem [#allocation5], 24
  %952 = vst [vmem:[%s951] sm:$0xff] %v950
  %s953 = scalar_lea.vmem [#allocation4], 128
  %v954 = vld [vmem:[%s953] sm:$0xff]
  %v955 = vld [vmem:[%s953 + $0x8] sm:$0xff]
  %v956 = vld [vmem:[%s953 + $0x10] sm:$0xff]
  %v957 = vld [vmem:[%s953 + $0x18] sm:$0xff]
  %958 = vmatpush.msra.mxu0 %v333
  %959 = vmatpush.msra.mxu0 %v329
  %960 = vmatpush.msra.mxu0 %v325
  %961 = vmatpush.msra.mxu0 %v321
  %962 = vmatpush.msra.mxu0 %v317
  %963 = vmatpush.msra.mxu0 %v313
  %964 = vmatpush.msra.mxu0 %v309
  %965 = vmatpush.msra.mxu0 %v305
  %966 = vmatpush.msra.mxu0 %v301
  %967 = vmatpush.msra.mxu0 %v297
  %968 = vmatpush.msra.mxu0 %v293
  %969 = vmatpush.msra.mxu0 %v289
  %970 = vmatpush.msra.mxu0 %v285
  %971 = vmatpush.msra.mxu0 %v281
  %972 = vmatpush.msra.mxu0 %v277
  %973 = vmatpush.msra.mxu0 %v273
  %974 = vmatmul.f32.gmra.mxu0 %v950
  %v975 = vpop.f32.mrf.mxu0
  %v976 = vadd.f32 0.0, %v975
  %977 = vdwg.mxu0
  %978 = vmatpush.msra.mxu0 %v334
  %979 = vmatpush.msra.mxu0 %v330
  %980 = vmatpush.msra.mxu0 %v326
  %981 = vmatpush.msra.mxu0 %v322
  %982 = vmatpush.msra.mxu0 %v318
  %983 = vmatpush.msra.mxu0 %v314
  %984 = vmatpush.msra.mxu0 %v310
  %985 = vmatpush.msra.mxu0 %v306
  %986 = vmatpush.msra.mxu0 %v302
  %987 = vmatpush.msra.mxu0 %v298
  %988 = vmatpush.msra.mxu0 %v294
  %989 = vmatpush.msra.mxu0 %v290
  %990 = vmatpush.msra.mxu0 %v286
  %991 = vmatpush.msra.mxu0 %v282
  %992 = vmatpush.msra.mxu0 %v278
  %993 = vmatpush.msra.mxu0 %v274
  %994 = vmatmul.f32.gmra.mxu0 %v950
  %v995 = vpop.f32.mrf.mxu0
  %v996 = vadd.f32 0.0, %v995
  %997 = vdwg.mxu0
  %998 = vmatpush.msra.mxu0 %v335
  %999 = vmatpush.msra.mxu0 %v331
  %1000 = vmatpush.msra.mxu0 %v327
  %1001 = vmatpush.msra.mxu0 %v323
  %1002 = vmatpush.msra.mxu0 %v319
  %1003 = vmatpush.msra.mxu0 %v315
  %1004 = vmatpush.msra.mxu0 %v311
  %1005 = vmatpush.msra.mxu0 %v307
  %1006 = vmatpush.msra.mxu0 %v303
  %1007 = vmatpush.msra.mxu0 %v299
  %1008 = vmatpush.msra.mxu0 %v295
  %1009 = vmatpush.msra.mxu0 %v291
  %1010 = vmatpush.msra.mxu0 %v287
  %1011 = vmatpush.msra.mxu0 %v283
  %1012 = vmatpush.msra.mxu0 %v279
  %1013 = vmatpush.msra.mxu0 %v275
  %1014 = vmatmul.f32.gmra.mxu0 %v950
  %v1015 = vpop.f32.mrf.mxu0
  %v1016 = vadd.f32 0.0, %v1015
  %1017 = vdwg.mxu0
  %1018 = vmatpush.msra.mxu0 %v336
  %1019 = vmatpush.msra.mxu0 %v332
  %1020 = vmatpush.msra.mxu0 %v328
  %1021 = vmatpush.msra.mxu0 %v324
  %1022 = vmatpush.msra.mxu0 %v320
  %1023 = vmatpush.msra.mxu0 %v316
  %1024 = vmatpush.msra.mxu0 %v312
  %1025 = vmatpush.msra.mxu0 %v308
  %1026 = vmatpush.msra.mxu0 %v304
  %1027 = vmatpush.msra.mxu0 %v300
  %1028 = vmatpush.msra.mxu0 %v296
  %1029 = vmatpush.msra.mxu0 %v292
  %1030 = vmatpush.msra.mxu0 %v288
  %1031 = vmatpush.msra.mxu0 %v284
  %1032 = vmatpush.msra.mxu0 %v280
  %1033 = vmatpush.msra.mxu0 %v276
  %1034 = vmatmul.f32.gmra.mxu0 %v950
  %v1035 = vpop.f32.mrf.mxu0
  %v1036 = vadd.f32 0.0, %v1035
  %1037 = vdwg.mxu0
  %v1038 = vadd.f32 %v954, %v976
  %v1039 = vadd.f32 %v955, %v996
  %v1040 = vadd.f32 %v956, %v1016
  %v1041 = vadd.f32 %v957, %v1036
  %v1042 = vxor.u32 %v1038, 2147483648
  %v1043 = vmul.f32 %v1042, 1.442695
  %v1044 = vpow.pop %v1043
  %v1045 = vadd.f32 %v1044, 1.0
  %v1046 = vrcp.pop %v1045
  %v1047 = vmul.f32 %v1045, %v1046
  %v1048 = vsub.f32 1.0, %v1047
  %v1049 = vmul.f32 %v1046, %v1048
  %v1050 = vadd.f32 %v1046, %v1049
  %vm1051 = vweird.f32 %v1045
  %vm1052 = vweird.f32 %v1046
  %vm1053 = vmor %vm1051, %vm1052
  %v1054 = vsel %vm1053, %v1046, %v1050
  %v1055 = vand.u32 2147483647, %v1045
  %vm1056 = vcmp.eq.f32.partialorder %v1055, 8.507059e+37
  %v1057 = vand.u32 %v1045, 2147483648
  %v1058 = vor.u32 1.1754944e-38, %v1057
  %v1059 = vsel %vm1056, %v1058, %v1054
  %v1060 = vmul.f32 1.0, %v1059
  %v1061 = vxor.u32 %v1039, 2147483648
  %v1062 = vmul.f32 %v1061, 1.442695
  %v1063 = vpow.pop %v1062
  %v1064 = vadd.f32 %v1063, 1.0
  %v1065 = vrcp.pop %v1064
  %v1066 = vmul.f32 %v1064, %v1065
  %v1067 = vsub.f32 1.0, %v1066
  %v1068 = vmul.f32 %v1065, %v1067
  %v1069 = vadd.f32 %v1065, %v1068
  %vm1070 = vweird.f32 %v1064
  %vm1071 = vweird.f32 %v1065
  %vm1072 = vmor %vm1070, %vm1071
  %v1073 = vsel %vm1072, %v1065, %v1069
  %v1074 = vand.u32 2147483647, %v1064
  %vm1075 = vcmp.eq.f32.partialorder %v1074, 8.507059e+37
  %v1076 = vand.u32 %v1064, 2147483648
  %v1077 = vor.u32 1.1754944e-38, %v1076
  %v1078 = vsel %vm1075, %v1077, %v1073
  %v1079 = vmul.f32 1.0, %v1078
  %v1080 = vtanh.pop %v1040
  %v1081 = vxor.u32 %v1041, 2147483648
  %v1082 = vmul.f32 %v1081, 1.442695
  %v1083 = vpow.pop %v1082
  %v1084 = vadd.f32 %v1083, 1.0
  %v1085 = vrcp.pop %v1084
  %v1086 = vmul.f32 %v1084, %v1085
  %v1087 = vsub.f32 1.0, %v1086
  %v1088 = vmul.f32 %v1085, %v1087
  %v1089 = vadd.f32 %v1085, %v1088
  %vm1090 = vweird.f32 %v1084
  %vm1091 = vweird.f32 %v1085
  %vm1092 = vmor %vm1090, %vm1091
  %v1093 = vsel %vm1092, %v1085, %v1089
  %v1094 = vand.u32 2147483647, %v1084
  %vm1095 = vcmp.eq.f32.partialorder %v1094, 8.507059e+37
  %v1096 = vand.u32 %v1084, 2147483648
  %v1097 = vor.u32 1.1754944e-38, %v1096
  %v1098 = vsel %vm1095, %v1097, %v1093
  %v1099 = vmul.f32 1.0, %v1098
  %v1100 = vmul.f32 %v1079, %v948
  %v1101 = vmul.f32 %v1060, %v1080
  %v1102 = vadd.f32 %v1100, %v1101
  %v1103 = vtanh.pop %v1102
  %v1104 = vmul.f32 %v1099, %v1103
  %s1105 = scalar_lea.vmem [#allocation5], 32
  %1106 = vst [vmem:[%s1105] sm:$0xff] %v1104
  %s1107 = scalar_lea.vmem [#allocation4], 160
  %v1108 = vld [vmem:[%s1107] sm:$0xff]
  %v1109 = vld [vmem:[%s1107 + $0x8] sm:$0xff]
  %v1110 = vld [vmem:[%s1107 + $0x10] sm:$0xff]
  %v1111 = vld [vmem:[%s1107 + $0x18] sm:$0xff]
  %1112 = vmatpush.msra.mxu0 %v333
  %1113 = vmatpush.msra.mxu0 %v329
  %1114 = vmatpush.msra.mxu0 %v325
  %1115 = vmatpush.msra.mxu0 %v321
  %1116 = vmatpush.msra.mxu0 %v317
  %1117 = vmatpush.msra.mxu0 %v313
  %1118 = vmatpush.msra.mxu0 %v309
  %1119 = vmatpush.msra.mxu0 %v305
  %1120 = vmatpush.msra.mxu0 %v301
  %1121 = vmatpush.msra.mxu0 %v297
  %1122 = vmatpush.msra.mxu0 %v293
  %1123 = vmatpush.msra.mxu0 %v289
  %1124 = vmatpush.msra.mxu0 %v285
  %1125 = vmatpush.msra.mxu0 %v281
  %1126 = vmatpush.msra.mxu0 %v277
  %1127 = vmatpush.msra.mxu0 %v273
  %1128 = vmatmul.f32.gmra.mxu0 %v1104
  %v1129 = vpop.f32.mrf.mxu0
  %v1130 = vadd.f32 0.0, %v1129
  %1131 = vdwg.mxu0
  %1132 = vmatpush.msra.mxu0 %v334
  %1133 = vmatpush.msra.mxu0 %v330
  %1134 = vmatpush.msra.mxu0 %v326
  %1135 = vmatpush.msra.mxu0 %v322
  %1136 = vmatpush.msra.mxu0 %v318
  %1137 = vmatpush.msra.mxu0 %v314
  %1138 = vmatpush.msra.mxu0 %v310
  %1139 = vmatpush.msra.mxu0 %v306
  %1140 = vmatpush.msra.mxu0 %v302
  %1141 = vmatpush.msra.mxu0 %v298
  %1142 = vmatpush.msra.mxu0 %v294
  %1143 = vmatpush.msra.mxu0 %v290
  %1144 = vmatpush.msra.mxu0 %v286
  %1145 = vmatpush.msra.mxu0 %v282
  %1146 = vmatpush.msra.mxu0 %v278
  %1147 = vmatpush.msra.mxu0 %v274
  %1148 = vmatmul.f32.gmra.mxu0 %v1104
  %v1149 = vpop.f32.mrf.mxu0
  %v1150 = vadd.f32 0.0, %v1149
  %1151 = vdwg.mxu0
  %1152 = vmatpush.msra.mxu0 %v335
  %1153 = vmatpush.msra.mxu0 %v331
  %1154 = vmatpush.msra.mxu0 %v327
  %1155 = vmatpush.msra.mxu0 %v323
  %1156 = vmatpush.msra.mxu0 %v319
  %1157 = vmatpush.msra.mxu0 %v315
  %1158 = vmatpush.msra.mxu0 %v311
  %1159 = vmatpush.msra.mxu0 %v307
  %1160 = vmatpush.msra.mxu0 %v303
  %1161 = vmatpush.msra.mxu0 %v299
  %1162 = vmatpush.msra.mxu0 %v295
  %1163 = vmatpush.msra.mxu0 %v291
  %1164 = vmatpush.msra.mxu0 %v287
  %1165 = vmatpush.msra.mxu0 %v283
  %1166 = vmatpush.msra.mxu0 %v279
  %1167 = vmatpush.msra.mxu0 %v275
  %1168 = vmatmul.f32.gmra.mxu0 %v1104
  %v1169 = vpop.f32.mrf.mxu0
  %v1170 = vadd.f32 0.0, %v1169
  %1171 = vdwg.mxu0
  %1172 = vmatpush.msra.mxu0 %v336
  %1173 = vmatpush.msra.mxu0 %v332
  %1174 = vmatpush.msra.mxu0 %v328
  %1175 = vmatpush.msra.mxu0 %v324
  %1176 = vmatpush.msra.mxu0 %v320
  %1177 = vmatpush.msra.mxu0 %v316
  %1178 = vmatpush.msra.mxu0 %v312
  %1179 = vmatpush.msra.mxu0 %v308
  %1180 = vmatpush.msra.mxu0 %v304
  %1181 = vmatpush.msra.mxu0 %v300
  %1182 = vmatpush.msra.mxu0 %v296
  %1183 = vmatpush.msra.mxu0 %v292
  %1184 = vmatpush.msra.mxu0 %v288
  %1185 = vmatpush.msra.mxu0 %v284
  %1186 = vmatpush.msra.mxu0 %v280
  %1187 = vmatpush.msra.mxu0 %v276
  %1188 = vmatmul.f32.gmra.mxu0 %v1104
  %v1189 = vpop.f32.mrf.mxu0
  %v1190 = vadd.f32 0.0, %v1189
  %1191 = vdwg.mxu0
  %v1192 = vadd.f32 %v1108, %v1130
  %v1193 = vadd.f32 %v1109, %v1150
  %v1194 = vadd.f32 %v1110, %v1170
  %v1195 = vadd.f32 %v1111, %v1190
  %v1196 = vxor.u32 %v1192, 2147483648
  %v1197 = vmul.f32 %v1196, 1.442695
  %v1198 = vpow.pop %v1197
  %v1199 = vadd.f32 %v1198, 1.0
  %v1200 = vrcp.pop %v1199
  %v1201 = vmul.f32 %v1199, %v1200
  %v1202 = vsub.f32 1.0, %v1201
  %v1203 = vmul.f32 %v1200, %v1202
  %v1204 = vadd.f32 %v1200, %v1203
  %vm1205 = vweird.f32 %v1199
  %vm1206 = vweird.f32 %v1200
  %vm1207 = vmor %vm1205, %vm1206
  %v1208 = vsel %vm1207, %v1200, %v1204
  %v1209 = vand.u32 2147483647, %v1199
  %vm1210 = vcmp.eq.f32.partialorder %v1209, 8.507059e+37
  %v1211 = vand.u32 %v1199, 2147483648
  %v1212 = vor.u32 1.1754944e-38, %v1211
  %v1213 = vsel %vm1210, %v1212, %v1208
  %v1214 = vmul.f32 1.0, %v1213
  %v1215 = vxor.u32 %v1193, 2147483648
  %v1216 = vmul.f32 %v1215, 1.442695
  %v1217 = vpow.pop %v1216
  %v1218 = vadd.f32 %v1217, 1.0
  %v1219 = vrcp.pop %v1218
  %v1220 = vmul.f32 %v1218, %v1219
  %v1221 = vsub.f32 1.0, %v1220
  %v1222 = vmul.f32 %v1219, %v1221
  %v1223 = vadd.f32 %v1219, %v1222
  %vm1224 = vweird.f32 %v1218
  %vm1225 = vweird.f32 %v1219
  %vm1226 = vmor %vm1224, %vm1225
  %v1227 = vsel %vm1226, %v1219, %v1223
  %v1228 = vand.u32 2147483647, %v1218
  %vm1229 = vcmp.eq.f32.partialorder %v1228, 8.507059e+37
  %v1230 = vand.u32 %v1218, 2147483648
  %v1231 = vor.u32 1.1754944e-38, %v1230
  %v1232 = vsel %vm1229, %v1231, %v1227
  %v1233 = vmul.f32 1.0, %v1232
  %v1234 = vtanh.pop %v1194
  %v1235 = vxor.u32 %v1195, 2147483648
  %v1236 = vmul.f32 %v1235, 1.442695
  %v1237 = vpow.pop %v1236
  %v1238 = vadd.f32 %v1237, 1.0
  %v1239 = vrcp.pop %v1238
  %v1240 = vmul.f32 %v1238, %v1239
  %v1241 = vsub.f32 1.0, %v1240
  %v1242 = vmul.f32 %v1239, %v1241
  %v1243 = vadd.f32 %v1239, %v1242
  %vm1244 = vweird.f32 %v1238
  %vm1245 = vweird.f32 %v1239
  %vm1246 = vmor %vm1244, %vm1245
  %v1247 = vsel %vm1246, %v1239, %v1243
  %v1248 = vand.u32 2147483647, %v1238
  %vm1249 = vcmp.eq.f32.partialorder %v1248, 8.507059e+37
  %v1250 = vand.u32 %v1238, 2147483648
  %v1251 = vor.u32 1.1754944e-38, %v1250
  %v1252 = vsel %vm1249, %v1251, %v1247
  %v1253 = vmul.f32 1.0, %v1252
  %v1254 = vmul.f32 %v1233, %v1102
  %v1255 = vmul.f32 %v1214, %v1234
  %v1256 = vadd.f32 %v1254, %v1255
  %v1257 = vtanh.pop %v1256
  %v1258 = vmul.f32 %v1253, %v1257
  %s1259 = scalar_lea.vmem [#allocation5], 40
  %1260 = vst [vmem:[%s1259] sm:$0xff] %v1258
  %s1261 = scalar_lea.vmem [#allocation4], 192
  %v1262 = vld [vmem:[%s1261] sm:$0xff]
  %v1263 = vld [vmem:[%s1261 + $0x8] sm:$0xff]
  %v1264 = vld [vmem:[%s1261 + $0x10] sm:$0xff]
  %v1265 = vld [vmem:[%s1261 + $0x18] sm:$0xff]
  %1266 = vmatpush.msra.mxu0 %v333
  %1267 = vmatpush.msra.mxu0 %v329
  %1268 = vmatpush.msra.mxu0 %v325
  %1269 = vmatpush.msra.mxu0 %v321
  %1270 = vmatpush.msra.mxu0 %v317
  %1271 = vmatpush.msra.mxu0 %v313
  %1272 = vmatpush.msra.mxu0 %v309
  %1273 = vmatpush.msra.mxu0 %v305
  %1274 = vmatpush.msra.mxu0 %v301
  %1275 = vmatpush.msra.mxu0 %v297
  %1276 = vmatpush.msra.mxu0 %v293
  %1277 = vmatpush.msra.mxu0 %v289
  %1278 = vmatpush.msra.mxu0 %v285
  %1279 = vmatpush.msra.mxu0 %v281
  %1280 = vmatpush.msra.mxu0 %v277
  %1281 = vmatpush.msra.mxu0 %v273
  %1282 = vmatmul.f32.gmra.mxu0 %v1258
  %v1283 = vpop.f32.mrf.mxu0
  %v1284 = vadd.f32 0.0, %v1283
  %1285 = vdwg.mxu0
  %1286 = vmatpush.msra.mxu0 %v334
  %1287 = vmatpush.msra.mxu0 %v330
  %1288 = vmatpush.msra.mxu0 %v326
  %1289 = vmatpush.msra.mxu0 %v322
  %1290 = vmatpush.msra.mxu0 %v318
  %1291 = vmatpush.msra.mxu0 %v314
  %1292 = vmatpush.msra.mxu0 %v310
  %1293 = vmatpush.msra.mxu0 %v306
  %1294 = vmatpush.msra.mxu0 %v302
  %1295 = vmatpush.msra.mxu0 %v298
  %1296 = vmatpush.msra.mxu0 %v294
  %1297 = vmatpush.msra.mxu0 %v290
  %1298 = vmatpush.msra.mxu0 %v286
  %1299 = vmatpush.msra.mxu0 %v282
  %1300 = vmatpush.msra.mxu0 %v278
  %1301 = vmatpush.msra.mxu0 %v274
  %1302 = vmatmul.f32.gmra.mxu0 %v1258
  %v1303 = vpop.f32.mrf.mxu0
  %v1304 = vadd.f32 0.0, %v1303
  %1305 = vdwg.mxu0
  %1306 = vmatpush.msra.mxu0 %v335
  %1307 = vmatpush.msra.mxu0 %v331
  %1308 = vmatpush.msra.mxu0 %v327
  %1309 = vmatpush.msra.mxu0 %v323
  %1310 = vmatpush.msra.mxu0 %v319
  %1311 = vmatpush.msra.mxu0 %v315
  %1312 = vmatpush.msra.mxu0 %v311
  %1313 = vmatpush.msra.mxu0 %v307
  %1314 = vmatpush.msra.mxu0 %v303
  %1315 = vmatpush.msra.mxu0 %v299
  %1316 = vmatpush.msra.mxu0 %v295
  %1317 = vmatpush.msra.mxu0 %v291
  %1318 = vmatpush.msra.mxu0 %v287
  %1319 = vmatpush.msra.mxu0 %v283
  %1320 = vmatpush.msra.mxu0 %v279
  %1321 = vmatpush.msra.mxu0 %v275
  %1322 = vmatmul.f32.gmra.mxu0 %v1258
  %v1323 = vpop.f32.mrf.mxu0
  %v1324 = vadd.f32 0.0, %v1323
  %1325 = vdwg.mxu0
  %1326 = vmatpush.msra.mxu0 %v336
  %1327 = vmatpush.msra.mxu0 %v332
  %1328 = vmatpush.msra.mxu0 %v328
  %1329 = vmatpush.msra.mxu0 %v324
  %1330 = vmatpush.msra.mxu0 %v320
  %1331 = vmatpush.msra.mxu0 %v316
  %1332 = vmatpush.msra.mxu0 %v312
  %1333 = vmatpush.msra.mxu0 %v308
  %1334 = vmatpush.msra.mxu0 %v304
  %1335 = vmatpush.msra.mxu0 %v300
  %1336 = vmatpush.msra.mxu0 %v296
  %1337 = vmatpush.msra.mxu0 %v292
  %1338 = vmatpush.msra.mxu0 %v288
  %1339 = vmatpush.msra.mxu0 %v284
  %1340 = vmatpush.msra.mxu0 %v280
  %1341 = vmatpush.msra.mxu0 %v276
  %1342 = vmatmul.f32.gmra.mxu0 %v1258
  %v1343 = vpop.f32.mrf.mxu0
  %v1344 = vadd.f32 0.0, %v1343
  %1345 = vdwg.mxu0
  %v1346 = vadd.f32 %v1262, %v1284
  %v1347 = vadd.f32 %v1263, %v1304
  %v1348 = vadd.f32 %v1264, %v1324
  %v1349 = vadd.f32 %v1265, %v1344
  %v1350 = vxor.u32 %v1346, 2147483648
  %v1351 = vmul.f32 %v1350, 1.442695
  %v1352 = vpow.pop %v1351
  %v1353 = vadd.f32 %v1352, 1.0
  %v1354 = vrcp.pop %v1353
  %v1355 = vmul.f32 %v1353, %v1354
  %v1356 = vsub.f32 1.0, %v1355
  %v1357 = vmul.f32 %v1354, %v1356
  %v1358 = vadd.f32 %v1354, %v1357
  %vm1359 = vweird.f32 %v1353
  %vm1360 = vweird.f32 %v1354
  %vm1361 = vmor %vm1359, %vm1360
  %v1362 = vsel %vm1361, %v1354, %v1358
  %v1363 = vand.u32 2147483647, %v1353
  %vm1364 = vcmp.eq.f32.partialorder %v1363, 8.507059e+37
  %v1365 = vand.u32 %v1353, 2147483648
  %v1366 = vor.u32 1.1754944e-38, %v1365
  %v1367 = vsel %vm1364, %v1366, %v1362
  %v1368 = vmul.f32 1.0, %v1367
  %v1369 = vxor.u32 %v1347, 2147483648
  %v1370 = vmul.f32 %v1369, 1.442695
  %v1371 = vpow.pop %v1370
  %v1372 = vadd.f32 %v1371, 1.0
  %v1373 = vrcp.pop %v1372
  %v1374 = vmul.f32 %v1372, %v1373
  %v1375 = vsub.f32 1.0, %v1374
  %v1376 = vmul.f32 %v1373, %v1375
  %v1377 = vadd.f32 %v1373, %v1376
  %vm1378 = vweird.f32 %v1372
  %vm1379 = vweird.f32 %v1373
  %vm1380 = vmor %vm1378, %vm1379
  %v1381 = vsel %vm1380, %v1373, %v1377
  %v1382 = vand.u32 2147483647, %v1372
  %vm1383 = vcmp.eq.f32.partialorder %v1382, 8.507059e+37
  %v1384 = vand.u32 %v1372, 2147483648
  %v1385 = vor.u32 1.1754944e-38, %v1384
  %v1386 = vsel %vm1383, %v1385, %v1381
  %v1387 = vmul.f32 1.0, %v1386
  %v1388 = vtanh.pop %v1348
  %v1389 = vxor.u32 %v1349, 2147483648
  %v1390 = vmul.f32 %v1389, 1.442695
  %v1391 = vpow.pop %v1390
  %v1392 = vadd.f32 %v1391, 1.0
  %v1393 = vrcp.pop %v1392
  %v1394 = vmul.f32 %v1392, %v1393
  %v1395 = vsub.f32 1.0, %v1394
  %v1396 = vmul.f32 %v1393, %v1395
  %v1397 = vadd.f32 %v1393, %v1396
  %vm1398 = vweird.f32 %v1392
  %vm1399 = vweird.f32 %v1393
  %vm1400 = vmor %vm1398, %vm1399
  %v1401 = vsel %vm1400, %v1393, %v1397
  %v1402 = vand.u32 2147483647, %v1392
  %vm1403 = vcmp.eq.f32.partialorder %v1402, 8.507059e+37
  %v1404 = vand.u32 %v1392, 2147483648
  %v1405 = vor.u32 1.1754944e-38, %v1404
  %v1406 = vsel %vm1403, %v1405, %v1401
  %v1407 = vmul.f32 1.0, %v1406
  %v1408 = vmul.f32 %v1387, %v1256
  %v1409 = vmul.f32 %v1368, %v1388
  %v1410 = vadd.f32 %v1408, %v1409
  %v1411 = vtanh.pop %v1410
  %v1412 = vmul.f32 %v1407, %v1411
  %s1413 = scalar_lea.vmem [#allocation5], 48
  %1414 = vst [vmem:[%s1413] sm:$0xff] %v1412
  %s1415 = scalar_lea.vmem [#allocation4], 224
  %v1416 = vld [vmem:[%s1415] sm:$0xff]
  %v1417 = vld [vmem:[%s1415 + $0x8] sm:$0xff]
  %v1418 = vld [vmem:[%s1415 + $0x10] sm:$0xff]
  %v1419 = vld [vmem:[%s1415 + $0x18] sm:$0xff]
  %1420 = vmatpush.msra.mxu0 %v333
  %1421 = vmatpush.msra.mxu0 %v329
  %1422 = vmatpush.msra.mxu0 %v325
  %1423 = vmatpush.msra.mxu0 %v321
  %1424 = vmatpush.msra.mxu0 %v317
  %1425 = vmatpush.msra.mxu0 %v313
  %1426 = vmatpush.msra.mxu0 %v309
  %1427 = vmatpush.msra.mxu0 %v305
  %1428 = vmatpush.msra.mxu0 %v301
  %1429 = vmatpush.msra.mxu0 %v297
  %1430 = vmatpush.msra.mxu0 %v293
  %1431 = vmatpush.msra.mxu0 %v289
  %1432 = vmatpush.msra.mxu0 %v285
  %1433 = vmatpush.msra.mxu0 %v281
  %1434 = vmatpush.msra.mxu0 %v277
  %1435 = vmatpush.msra.mxu0 %v273
  %1436 = vmatmul.f32.gmra.mxu0 %v1412
  %v1437 = vpop.f32.mrf.mxu0
  %v1438 = vadd.f32 0.0, %v1437
  %1439 = vdwg.mxu0
  %1440 = vmatpush.msra.mxu0 %v334
  %1441 = vmatpush.msra.mxu0 %v330
  %1442 = vmatpush.msra.mxu0 %v326
  %1443 = vmatpush.msra.mxu0 %v322
  %1444 = vmatpush.msra.mxu0 %v318
  %1445 = vmatpush.msra.mxu0 %v314
  %1446 = vmatpush.msra.mxu0 %v310
  %1447 = vmatpush.msra.mxu0 %v306
  %1448 = vmatpush.msra.mxu0 %v302
  %1449 = vmatpush.msra.mxu0 %v298
  %1450 = vmatpush.msra.mxu0 %v294
  %1451 = vmatpush.msra.mxu0 %v290
  %1452 = vmatpush.msra.mxu0 %v286
  %1453 = vmatpush.msra.mxu0 %v282
  %1454 = vmatpush.msra.mxu0 %v278
  %1455 = vmatpush.msra.mxu0 %v274
  %1456 = vmatmul.f32.gmra.mxu0 %v1412
  %v1457 = vpop.f32.mrf.mxu0
  %v1458 = vadd.f32 0.0, %v1457
  %1459 = vdwg.mxu0
  %1460 = vmatpush.msra.mxu0 %v335
  %1461 = vmatpush.msra.mxu0 %v331
  %1462 = vmatpush.msra.mxu0 %v327
  %1463 = vmatpush.msra.mxu0 %v323
  %1464 = vmatpush.msra.mxu0 %v319
  %1465 = vmatpush.msra.mxu0 %v315
  %1466 = vmatpush.msra.mxu0 %v311
  %1467 = vmatpush.msra.mxu0 %v307
  %1468 = vmatpush.msra.mxu0 %v303
  %1469 = vmatpush.msra.mxu0 %v299
  %1470 = vmatpush.msra.mxu0 %v295
  %1471 = vmatpush.msra.mxu0 %v291
  %1472 = vmatpush.msra.mxu0 %v287
  %1473 = vmatpush.msra.mxu0 %v283
  %1474 = vmatpush.msra.mxu0 %v279
  %1475 = vmatpush.msra.mxu0 %v275
  %1476 = vmatmul.f32.gmra.mxu0 %v1412
  %v1477 = vpop.f32.mrf.mxu0
  %v1478 = vadd.f32 0.0, %v1477
  %1479 = vdwg.mxu0
  %1480 = vmatpush.msra.mxu0 %v336
  %1481 = vmatpush.msra.mxu0 %v332
  %1482 = vmatpush.msra.mxu0 %v328
  %1483 = vmatpush.msra.mxu0 %v324
  %1484 = vmatpush.msra.mxu0 %v320
  %1485 = vmatpush.msra.mxu0 %v316
  %1486 = vmatpush.msra.mxu0 %v312
  %1487 = vmatpush.msra.mxu0 %v308
  %1488 = vmatpush.msra.mxu0 %v304
  %1489 = vmatpush.msra.mxu0 %v300
  %1490 = vmatpush.msra.mxu0 %v296
  %1491 = vmatpush.msra.mxu0 %v292
  %1492 = vmatpush.msra.mxu0 %v288
  %1493 = vmatpush.msra.mxu0 %v284
  %1494 = vmatpush.msra.mxu0 %v280
  %1495 = vmatpush.msra.mxu0 %v276
  %1496 = vmatmul.f32.gmra.mxu0 %v1412
  %v1497 = vpop.f32.mrf.mxu0
  %v1498 = vadd.f32 0.0, %v1497
  %1499 = vdwg.mxu0
  %v1500 = vadd.f32 %v1416, %v1438
  %v1501 = vadd.f32 %v1417, %v1458
  %v1502 = vadd.f32 %v1418, %v1478
  %v1503 = vadd.f32 %v1419, %v1498
  %v1504 = vxor.u32 %v1500, 2147483648
  %v1505 = vmul.f32 %v1504, 1.442695
  %v1506 = vpow.pop %v1505
  %v1507 = vadd.f32 %v1506, 1.0
  %v1508 = vrcp.pop %v1507
  %v1509 = vmul.f32 %v1507, %v1508
  %v1510 = vsub.f32 1.0, %v1509
  %v1511 = vmul.f32 %v1508, %v1510
  %v1512 = vadd.f32 %v1508, %v1511
  %vm1513 = vweird.f32 %v1507
  %vm1514 = vweird.f32 %v1508
  %vm1515 = vmor %vm1513, %vm1514
  %v1516 = vsel %vm1515, %v1508, %v1512
  %v1517 = vand.u32 2147483647, %v1507
  %vm1518 = vcmp.eq.f32.partialorder %v1517, 8.507059e+37
  %v1519 = vand.u32 %v1507, 2147483648
  %v1520 = vor.u32 1.1754944e-38, %v1519
  %v1521 = vsel %vm1518, %v1520, %v1516
  %v1522 = vmul.f32 1.0, %v1521
  %v1523 = vxor.u32 %v1501, 2147483648
  %v1524 = vmul.f32 %v1523, 1.442695
  %v1525 = vpow.pop %v1524
  %v1526 = vadd.f32 %v1525, 1.0
  %v1527 = vrcp.pop %v1526
  %v1528 = vmul.f32 %v1526, %v1527
  %v1529 = vsub.f32 1.0, %v1528
  %v1530 = vmul.f32 %v1527, %v1529
  %v1531 = vadd.f32 %v1527, %v1530
  %vm1532 = vweird.f32 %v1526
  %vm1533 = vweird.f32 %v1527
  %vm1534 = vmor %vm1532, %vm1533
  %v1535 = vsel %vm1534, %v1527, %v1531
  %v1536 = vand.u32 2147483647, %v1526
  %vm1537 = vcmp.eq.f32.partialorder %v1536, 8.507059e+37
  %v1538 = vand.u32 %v1526, 2147483648
  %v1539 = vor.u32 1.1754944e-38, %v1538
  %v1540 = vsel %vm1537, %v1539, %v1535
  %v1541 = vmul.f32 1.0, %v1540
  %v1542 = vtanh.pop %v1502
  %v1543 = vxor.u32 %v1503, 2147483648
  %v1544 = vmul.f32 %v1543, 1.442695
  %v1545 = vpow.pop %v1544
  %v1546 = vadd.f32 %v1545, 1.0
  %v1547 = vrcp.pop %v1546
  %v1548 = vmul.f32 %v1546, %v1547
  %v1549 = vsub.f32 1.0, %v1548
  %v1550 = vmul.f32 %v1547, %v1549
  %v1551 = vadd.f32 %v1547, %v1550
  %vm1552 = vweird.f32 %v1546
  %vm1553 = vweird.f32 %v1547
  %vm1554 = vmor %vm1552, %vm1553
  %v1555 = vsel %vm1554, %v1547, %v1551
  %v1556 = vand.u32 2147483647, %v1546
  %vm1557 = vcmp.eq.f32.partialorder %v1556, 8.507059e+37
  %v1558 = vand.u32 %v1546, 2147483648
  %v1559 = vor.u32 1.1754944e-38, %v1558
  %v1560 = vsel %vm1557, %v1559, %v1555
  %v1561 = vmul.f32 1.0, %v1560
  %v1562 = vmul.f32 %v1541, %v1410
  %v1563 = vmul.f32 %v1522, %v1542
  %v1564 = vadd.f32 %v1562, %v1563
  %v1565 = vtanh.pop %v1564
  %v1566 = vmul.f32 %v1561, %v1565
  %s1567 = scalar_lea.vmem [#allocation5], 56
  %1568 = vst [vmem:[%s1567] sm:$0xff] %v1566
  %1569 = vst [vmem:[#allocation2] sm:$0xff] %v1566
  %1570 = vst [vmem:[#allocation3] sm:$0xff] %v1564
  %v1571 = vld [vmem:[#allocation5] sm:$0xff]
  %v1572 = vld [vmem:[#allocation5 + $0x8] sm:$0xff]
  %v1573 = vld [vmem:[#allocation5 + $0x10] sm:$0xff]
  %v1574 = vld [vmem:[#allocation5 + $0x18] sm:$0xff]
  %v1575 = vld [vmem:[#allocation5 + $0x20] sm:$0xff]
  %v1576 = vld [vmem:[#allocation5 + $0x28] sm:$0xff]
  %v1577 = vld [vmem:[#allocation5 + $0x30] sm:$0xff]
  %v1578 = vld [vmem:[#allocation5 + $0x38] sm:$0xff]
  %v1579 = vld [vmem:[%s4] sm:$0xff]
  %v1580 = vld [vmem:[%s4 + $0x8] sm:$0xff]
  %v1581 = vld [vmem:[%s4 + $0x10] sm:$0xff]
  %v1582 = vld [vmem:[%s4 + $0x18] sm:$0xff]
  %v1583 = vld [vmem:[%s4 + $0x20] sm:$0xff]
  %v1584 = vld [vmem:[%s4 + $0x28] sm:$0xff]
  %v1585 = vld [vmem:[%s4 + $0x30] sm:$0xff]
  %v1586 = vld [vmem:[%s4 + $0x38] sm:$0xff]
  %v1587 = vld [vmem:[%s4 + $0x40] sm:$0xff]
  %v1588 = vld [vmem:[%s4 + $0x48] sm:$0xff]
  %v1589 = vld [vmem:[%s4 + $0x50] sm:$0xff]
  %v1590 = vld [vmem:[%s4 + $0x58] sm:$0xff]
  %v1591 = vld [vmem:[%s4 + $0x60] sm:$0xff]
  %v1592 = vld [vmem:[%s4 + $0x68] sm:$0xff]
  %v1593 = vld [vmem:[%s4 + $0x70] sm:$0xff]
  %v1594 = vld [vmem:[%s4 + $0x78] sm:$0xff]
  %1595 = vmatpush.msra.mxu0 %v1594
  %1596 = vmatpush.msra.mxu0 %v1593
  %1597 = vmatpush.msra.mxu0 %v1592
  %1598 = vmatpush.msra.mxu0 %v1591
  %1599 = vmatpush.msra.mxu0 %v1590
  %1600 = vmatpush.msra.mxu0 %v1589
  %1601 = vmatpush.msra.mxu0 %v1588
  %1602 = vmatpush.msra.mxu0 %v1587
  %1603 = vmatpush.msra.mxu0 %v1586
  %1604 = vmatpush.msra.mxu0 %v1585
  %1605 = vmatpush.msra.mxu0 %v1584
  %1606 = vmatpush.msra.mxu0 %v1583
  %1607 = vmatpush.msra.mxu0 %v1582
  %1608 = vmatpush.msra.mxu0 %v1581
  %1609 = vmatpush.msra.mxu0 %v1580
  %1610 = vmatpush.msra.mxu0 %v1579
  %1611 = vmatmul.f32.gmra.mxu0 %v1571
  %v1612 = vpop.f32.mrf.mxu0
  %v1613 = vadd.f32 0.0, %v1612
  %1614 = vmatmul.f32.gmra.mxu0 %v1572
  %v1615 = vpop.f32.mrf.mxu0
  %v1616 = vadd.f32 0.0, %v1615
  %1617 = vmatmul.f32.gmra.mxu0 %v1573
  %v1618 = vpop.f32.mrf.mxu0
  %v1619 = vadd.f32 0.0, %v1618
  %1620 = vmatmul.f32.gmra.mxu0 %v1574
  %v1621 = vpop.f32.mrf.mxu0
  %v1622 = vadd.f32 0.0, %v1621
  %1623 = vmatmul.f32.gmra.mxu0 %v1575
  %v1624 = vpop.f32.mrf.mxu0
  %v1625 = vadd.f32 0.0, %v1624
  %1626 = vmatmul.f32.gmra.mxu0 %v1576
  %v1627 = vpop.f32.mrf.mxu0
  %v1628 = vadd.f32 0.0, %v1627
  %1629 = vmatmul.f32.gmra.mxu0 %v1577
  %v1630 = vpop.f32.mrf.mxu0
  %v1631 = vadd.f32 0.0, %v1630
  %1632 = vmatmul.f32.gmra.mxu0 %v1578
  %v1633 = vpop.f32.mrf.mxu0
  %v1634 = vadd.f32 0.0, %v1633
  %1635 = vdwg.mxu0
  %1636 = vst [vmem:[%s5] sm:$0xff] %v1613
  %1637 = vst [vmem:[%s5 + $0x8] sm:$0xff] %v1616
  %1638 = vst [vmem:[%s5 + $0x10] sm:$0xff] %v1619
  %1639 = vst [vmem:[%s5 + $0x18] sm:$0xff] %v1622
  %1640 = vst [vmem:[%s5 + $0x20] sm:$0xff] %v1625
  %1641 = vst [vmem:[%s5 + $0x28] sm:$0xff] %v1628
  %1642 = vst [vmem:[%s5 + $0x30] sm:$0xff] %v1631
  %1643 = vst [vmem:[%s5 + $0x38] sm:$0xff] %v1634
  // Predicated region
  $region26: #{cpc_minion_forward.1} parent=0 // pred_check
    _
  $region27: #{cpc_minion_forward.1} parent=0 // pred_check_branch
    %1645 = sbr.rel (0) target = $region29
  $region28: #{cpc_minion_forward.1} parent=0 // pred_region
    _
  $region29: #{cpc_minion_forward.1} parent=0 // pred_fallthru
    _
  // Predicated region
  $region30: #{cpc_minion_forward.1} parent=0 // pred_check
    _
  $region31: #{cpc_minion_forward.1} parent=0 // pred_check_branch
    %1647 = sbr.rel (0) target = $region33
  $region32: #{cpc_minion_forward.1} parent=0 // pred_region
    _
  $region33: #{cpc_minion_forward.1} parent=0 // pred_fallthru
    _

</llo_original>
